<compile_context>
chip_gen: v6e
topology: v6e:2x2x1
jax: 0.10.0
libtpu: 0.0.40
codegen_flags: <defaults>
</compile_context>

<pallas_src>
import functools
import numpy as np
import jax
import jax.numpy as jnp
from jax.experimental import pallas as pl
from jax.experimental.pallas import tpu as pltpu


def _vmem_capacity_bytes():
    """Best-effort VMEM capacity query (falls back to the v7x 64 MiB floor)."""
    try:
        return int(pltpu.get_tpu_info().vmem_capacity_bytes)
    except Exception:  # older jax / query not available
        return 64 * 1024 * 1024


def _aspp_kernel(x_ref, w_ref, b_ref, out_ref, *, groups, kp, s_len):
    """One (batch, channel-chunk) grid step of the fused ASPP head.

    x_ref  : (Cb, L)     bf16 zero-padded flattened spatial slab
                         (channels on sublanes, flat padded spatial on lanes).
    w_ref  : (T*Kp, Cb)  bf16 packed per-tap weights, grouped by row offset
                         (deduped across branches, K zero-padded to Kp).
    b_ref  : (Kp, 1)     f32 summed branch biases (zero in padded K rows).
    out_ref: (Kp, S)     f32 lane-dense output block, resident across the
                         channel-chunk reduction axis (the accumulator).
    groups : static tuple of (m0, starts): rows [m0, m0+len(starts)*Kp) of
             w_ref form one row-offset group; `starts` are the static flat
             offsets of its column taps inside that group's partial.
    """
    c = pl.program_id(1)

    @pl.when(c == 0)
    def _init():
        # Fold the summed bias in as the accumulator init.
        out_ref[...] = jnp.broadcast_to(b_ref[...], out_ref.shape)

    x = x_ref[...]                                     # (Cb, L) bf16
    acc = jnp.zeros(out_ref.shape, jnp.float32)
    for m0, starts in groups:
        m1 = m0 + len(starts) * kp
        # One MXU pass per row-offset group over the *unshifted* slab.
        part = jnp.dot(w_ref[m0:m1, :], x,
                       preferred_element_type=jnp.float32)   # (n_g*Kp, L) f32
        for j, s in enumerate(starts):
            # Tap shift applied to the small (Kp, L) partial, not the
            # (Cb, L) input.  Static slice; out-of-row values land only in
            # output columns that the wrapper discards.
            acc = acc + part[j * kp:(j + 1) * kp, s:s + s_len]

    # Single read-modify-write of the resident accumulator per grid step
    # (was one per tap in v1).
    # TODO(synk): register-tile the S axis (e.g. 512-lane tiles) so the
    # accumulator tile stays in vregs across all taps and is stored once,
    # and drive the tap loop via lax.fori_loop + SMEM start table.
    out_ref[...] += acc


def classifier_module_forward(x_nchw, weights_oihw, biases,
                              dilation_series, padding_series,
                              compute_dtype=jnp.bfloat16):
    """x_nchw: (N, C, H, W); weights_oihw: (B, K, C, 3, 3); biases: (B, K).

    Returns (N, K, H, W) == sum_b Conv2d(..., dilation=d_b, padding=p_b)(x).
    """
    N, C, H, W = (int(d) for d in x_nchw.shape)
    B, K = int(weights_oihw.shape[0]), int(weights_oihw.shape[1])

    # Shared spatial padding wide enough for every branch's taps.
    P = max(max(p, 2 * d - p) for d, p in zip(dilation_series, padding_series))
    Hp, Wp = H + 2 * P, W + 2 * P
    S = H * Wp                       # flattened (padded-W) output length
    L = Hp * Wp + 2 * P              # flat slab length incl. front/back guards
    Kp = -(-K // 8) * 8              # pad classes to a sublane multiple

    # Per-generation channel-chunk size (reduction tile): 256 on 64 MiB-VMEM
    # parts (v7x), 512 otherwise; channels zero-padded to a multiple of Cb so
    # n_cc is exact (no silently dropped tail channels).
    vmem_cap = _vmem_capacity_bytes()
    cb_target = 256 if vmem_cap <= 64 * 1024 * 1024 else 512
    Cb = C if C <= cb_target else cb_target
    Cpad = -(-C // Cb) * Cb
    n_cc = Cpad // Cb
    assert n_cc * Cb == Cpad

    # ---- input slab --------------------------------------------------------
    # NCHW stays NCHW: pad channels + spatial, flatten (Hp, Wp) onto the lane
    # axis and add P guard zeros front/back so every tap's partial slice is a
    # static in-bounds window.
    # TODO(synk): fuse the pad/cast into the kernel (manual DMA + masking) so
    # the padded bf16 slab is never materialized in HBM.
    xpad = jnp.pad(x_nchw, ((0, 0), (0, Cpad - C), (P, P), (P, P)))
    xflat = jnp.pad(xpad.reshape(N, Cpad, Hp * Wp), ((0, 0), (0, 0), (P, P)))
    xflat = xflat.astype(compute_dtype)

    # ---- weights: dedupe coincident taps, group by row offset, pack --------
    tap_w = {}
    for b, (d, p) in enumerate(zip(dilation_series, padding_series)):
        for ki in range(3):
            for kj in range(3):
                off = (ki * d - p, kj * d - p)
                wkc = weights_oihw[b, :, :, ki, kj]            # (K, C)
                tap_w[off] = wkc if off not in tap_w else tap_w[off] + wkc

    row_offsets = sorted({di for di, _ in tap_w})
    slabs, groups, m0 = [], [], 0
    for di in row_offsets:
        djs = sorted(dj for di2, dj in tap_w if di2 == di)
        starts = tuple(P + (P + di) * Wp + dj for dj in djs)
        groups.append((m0, starts))
        for dj in djs:
            slabs.append(jnp.pad(tap_w[(di, dj)],
                                 ((0, Kp - K), (0, Cpad - C))))
        m0 += len(djs) * Kp
    w_pack = jnp.concatenate(slabs, axis=0).astype(compute_dtype)  # (T*Kp, Cp)
    M_total = m0

    bsum = jnp.sum(biases, axis=0)
    bsum = jnp.pad(bsum, (0, Kp - K)).reshape(Kp, 1).astype(jnp.float32)

    # ---- VMEM budget / cost hint -------------------------------------------
    esize = jnp.dtype(compute_dtype).itemsize
    max_ng = max(len(g[1]) for g in groups)
    per_step = (2 * Cb * L * esize                # x block, double-buffered
                + 2 * M_total * Cb * esize        # weight block
                + 2 * Kp * 4                      # bias
                + 2 * Kp * S * 4                  # resident out + local acc
                + max_ng * Kp * L * 4)            # largest group partial
    vmem_limit = int(min(max(2 * per_step, 32 * 1024 * 1024),
                         64 * 1024 * 1024))

    cost = pl.CostEstimate(
        flops=int(2 * N * M_total * Cpad * L),
        transcendentals=0,
        bytes_accessed=int(N * Cpad * L * esize
                           + N * M_total * Cpad * esize
                           + N * Kp * S * 4))

    kernel = functools.partial(_aspp_kernel, groups=tuple(groups),
                               kp=Kp, s_len=S)

    out_flat = pl.pallas_call(
        kernel,
        out_shape=jax.ShapeDtypeStruct((N, Kp, S), jnp.float32),
        grid=(N, n_cc),
        in_specs=[
            pl.BlockSpec((None, Cb, L), lambda n, c: (n, c, 0)),
            pl.BlockSpec((M_total, Cb), lambda n, c: (0, c)),
            pl.BlockSpec((Kp, 1), lambda n, c: (0, 0)),
        ],
        out_specs=pl.BlockSpec((None, Kp, S), lambda n, c: (n, 0, 0)),
        compiler_params=pltpu.CompilerParams(
            dimension_semantics=("parallel", "arbitrary"),
            vmem_limit_bytes=vmem_limit),
        cost_estimate=cost,
    )(xflat, w_pack, bsum)
    # TODO(synk): add a halo'd H/S-tile "parallel" grid axis ahead of the
    # channel-reduction axis so v7x's second TensorCore is used at batch 1,
    # and to trim the padded-column work the final slice discards.

    # (N, Kp, H*Wp) -> drop padded classes -> (N, K, H, Wp) -> drop W padding.
    return out_flat[:, :K, :].reshape(N, K, H, Wp)[:, :, :, P:P + W]


def _reference_forward(x_nchw, weights_oihw, biases, dilation_series,
                       padding_series):
    out = None
    for i, (d, p) in enumerate(zip(dilation_series, padding_series)):
        y = jax.lax.conv_general_dilated(
            x_nchw, weights_oihw[i],
            window_strides=(1, 1),
            padding=[(p, p), (p, p)],
            rhs_dilation=(d, d),
            dimension_numbers=("NCHW", "OIHW", "NCHW"))
        y = y + biases[i][None, :, None, None]
        out = y if out is None else out + y
    return out


if __name__ == "__main__":
    # Small, deterministic config.
    N, C, H, W = 2, 4, 16, 16
    num_classes = 5
    dilation_series = [1, 2, 3]
    padding_series = [1, 2, 3]
    B = len(dilation_series)

    key = jax.random.PRNGKey(0)
    kw, kb, kx = jax.random.split(key, 3)
    # weight.data.normal_(0, 0.01) per the module's __init__
    weights = 0.01 * jax.random.normal(kw, (B, num_classes, C, 3, 3),
                                       dtype=jnp.float32)
    # Conv2d default bias init: U(-1/sqrt(fan_in), 1/sqrt(fan_in))
    bound = 1.0 / np.sqrt(C * 3 * 3)
    biases = jax.random.uniform(kb, (B, num_classes), jnp.float32,
                                minval=-bound, maxval=bound)
    x = jax.random.normal(kx, (N, C, H, W), dtype=jnp.float32)

    out = classifier_module_forward(x, weights, biases, dilation_series,
                                    padding_series)
    out = jax.block_until_ready(out)

    ref = jax.block_until_ready(
        _reference_forward(x, weights, biases, dilation_series, padding_series))

    # bf16 matmul operands (f32 accumulation) => bf16-level tolerance against
    # the exact f32 reference (observed error ~1e-3 at these magnitudes).
    np.testing.assert_allclose(np.asarray(out), np.asarray(ref),
                               rtol=1e-2, atol=1e-2)
    print("KERNEL_OK")
</pallas_src>

<mosaic_0001>
module attributes {stable_mosaic.version = 11 : i64} {
  func.func @_aspp_kernel(%arg0: i32, %arg1: i32, %arg2: memref<1x4x490xbf16, #tpu.memory_space<vmem>>, %arg3: memref<200x4xbf16, #tpu.memory_space<vmem>>, %arg4: memref<8x1xf32, #tpu.memory_space<vmem>>, %arg5: memref<1x8x352xf32, #tpu.memory_space<vmem>>) attributes {dimension_semantics = [#tpu.dimension_semantics<parallel>, #tpu.dimension_semantics<arbitrary>], iteration_bounds = array<i64: 2, 1>, scalar_prefetch = 0 : i64, scratch_operands = 0 : i64, tpu.core_type = #tpu.core_type<tc>, window_params = [{transform_indices = @transform_0, window_bounds = array<i64: 1, 4, 490>}, {transform_indices = @transform_1, window_bounds = array<i64: 200, 4>}, {pipeline_mode = #tpu.pipeline_mode<synchronous>, transform_indices = @transform_2, window_bounds = array<i64: 8, 1>}, {transform_indices = @transform_3, window_bounds = array<i64: 1, 8, 352>}]} {
    %c0_i32 = arith.constant 0 : i32
    %0 = arith.cmpi eq, %arg1, %c0_i32 : i32
    %1 = arith.extui %0 : i1 to i32
    %c0_i32_0 = arith.constant 0 : i32
    %2 = arith.cmpi ne, %1, %c0_i32_0 : i32
    scf.if %2 {
      %c0_24 = arith.constant 0 : index
      %c0_25 = arith.constant 0 : index
      %76 = vector.load %arg4[%c0_24, %c0_25] : memref<8x1xf32, #tpu.memory_space<vmem>>, vector<8x1xf32>
      %77 = vector.shape_cast %76 : vector<8x1xf32> to vector<8x1xf32>
      %78 = vector.broadcast %77 : vector<8x1xf32> to vector<8x352xf32>
      %c0_26 = arith.constant 0 : index
      %c0_27 = arith.constant 0 : index
      %c0_28 = arith.constant 0 : index
      %79 = vector.load %arg5[%c0_26, %c0_27, %c0_28] : memref<1x8x352xf32, #tpu.memory_space<vmem>>, vector<1x8x352xf32>
      %80 = vector.shape_cast %79 : vector<1x8x352xf32> to vector<8x352xf32>
      %81 = vector.shape_cast %78 : vector<8x352xf32> to vector<1x8x352xf32>
      tpu.vector_store %arg5[%c0_26, %c0_27, %c0_28], %81 {strides = array<i32>} : memref<1x8x352xf32, #tpu.memory_space<vmem>>, vector<1x8x352xf32>,
    } else {
    }
    %c0 = arith.constant 0 : index
    %c0_1 = arith.constant 0 : index
    %c0_2 = arith.constant 0 : index
    %3 = vector.load %arg2[%c0, %c0_1, %c0_2] : memref<1x4x490xbf16, #tpu.memory_space<vmem>>, vector<1x4x490xbf16>
    %4 = vector.shape_cast %3 : vector<1x4x490xbf16> to vector<4x490xbf16>
    %cst = arith.constant 0.000000e+00 : f32
    %5 = vector.broadcast %cst : f32 to vector<8x352xf32>
    %c0_3 = arith.constant 0 : index
    %c0_4 = arith.constant 0 : index
    %6 = vector.load %arg3[%c0_3, %c0_4] : memref<200x4xbf16, #tpu.memory_space<vmem>>, vector<24x4xbf16>
    %cst_5 = arith.constant dense<0.000000e+00> : vector<24x490xf32>
    %7 = tpu.matmul %6, %4, %cst_5 {dimension_numbers = #tpu.dot_dimension_numbers<[1], [0], [0], [1], [0, 0, 1, 1], [], []>} : vector<24x4xbf16>, vector<4x490xbf16>, vector<24x490xf32> -> vector<24x490xf32>
    %8 = vector.extract_strided_slice %7 {offsets = [0, 0], sizes = [8, 352], strides = [1, 1]} : vector<24x490xf32> to vector<8x352xf32>
    %9 = arith.addf %5, %8 : vector<8x352xf32>
    %10 = vector.extract_strided_slice %7 {offsets = [8, 3], sizes = [8, 352], strides = [1, 1]} : vector<24x490xf32> to vector<8x352xf32>
    %11 = arith.addf %9, %10 : vector<8x352xf32>
    %12 = vector.extract_strided_slice %7 {offsets = [16, 6], sizes = [8, 352], strides = [1, 1]} : vector<24x490xf32> to vector<8x352xf32>
    %13 = arith.addf %11, %12 : vector<8x352xf32>
    %c24 = arith.constant 24 : index
    %c0_6 = arith.constant 0 : index
    %14 = vector.load %arg3[%c24, %c0_6] : memref<200x4xbf16, #tpu.memory_space<vmem>>, vector<24x4xbf16>
    %cst_7 = arith.constant dense<0.000000e+00> : vector<24x490xf32>
    %15 = tpu.matmul %14, %4, %cst_7 {dimension_numbers = #tpu.dot_dimension_numbers<[1], [0], [0], [1], [0, 0, 1, 1], [], []>} : vector<24x4xbf16>, vector<4x490xbf16>, vector<24x490xf32> -> vector<24x490xf32>
    %16 = vector.extract_strided_slice %15 {offsets = [0, 23], sizes = [8, 352], strides = [1, 1]} : vector<24x490xf32> to vector<8x352xf32>
    %17 = arith.addf %13, %16 : vector<8x352xf32>
    %18 = vector.extract_strided_slice %15 {offsets = [8, 25], sizes = [8, 352], strides = [1, 1]} : vector<24x490xf32> to vector<8x352xf32>
    %19 = arith.addf %17, %18 : vector<8x352xf32>
    %20 = vector.extract_strided_slice %15 {offsets = [16, 27], sizes = [8, 352], strides = [1, 1]} : vector<24x490xf32> to vector<8x352xf32>
    %21 = arith.addf %19, %20 : vector<8x352xf32>
    %c48 = arith.constant 48 : index
    %c0_8 = arith.constant 0 : index
    %22 = vector.load %arg3[%c48, %c0_8] : memref<200x4xbf16, #tpu.memory_space<vmem>>, vector<24x4xbf16>
    %cst_9 = arith.constant dense<0.000000e+00> : vector<24x490xf32>
    %23 = tpu.matmul %22, %4, %cst_9 {dimension_numbers = #tpu.dot_dimension_numbers<[1], [0], [0], [1], [0, 0, 1, 1], [], []>} : vector<24x4xbf16>, vector<4x490xbf16>, vector<24x490xf32> -> vector<24x490xf32>
    %24 = vector.extract_strided_slice %23 {offsets = [0, 46], sizes = [8, 352], strides = [1, 1]} : vector<24x490xf32> to vector<8x352xf32>
    %25 = arith.addf %21, %24 : vector<8x352xf32>
    %26 = vector.extract_strided_slice %23 {offsets = [8, 47], sizes = [8, 352], strides = [1, 1]} : vector<24x490xf32> to vector<8x352xf32>
    %27 = arith.addf %25, %26 : vector<8x352xf32>
    %28 = vector.extract_strided_slice %23 {offsets = [16, 48], sizes = [8, 352], strides = [1, 1]} : vector<24x490xf32> to vector<8x352xf32>
    %29 = arith.addf %27, %28 : vector<8x352xf32>
    %c72 = arith.constant 72 : index
    %c0_10 = arith.constant 0 : index
    %30 = vector.load %arg3[%c72, %c0_10] : memref<200x4xbf16, #tpu.memory_space<vmem>>, vector<56x4xbf16>
    %cst_11 = arith.constant dense<0.000000e+00> : vector<56x490xf32>
    %31 = tpu.matmul %30, %4, %cst_11 {dimension_numbers = #tpu.dot_dimension_numbers<[1], [0], [0], [1], [0, 0, 1, 1], [], []>} : vector<56x4xbf16>, vector<4x490xbf16>, vector<56x490xf32> -> vector<56x490xf32>
    %32 = vector.extract_strided_slice %31 {offsets = [0, 66], sizes = [8, 352], strides = [1, 1]} : vector<56x490xf32> to vector<8x352xf32>
    %33 = arith.addf %29, %32 : vector<8x352xf32>
    %34 = vector.extract_strided_slice %31 {offsets = [8, 67], sizes = [8, 352], strides = [1, 1]} : vector<56x490xf32> to vector<8x352xf32>
    %35 = arith.addf %33, %34 : vector<8x352xf32>
    %36 = vector.extract_strided_slice %31 {offsets = [16, 68], sizes = [8, 352], strides = [1, 1]} : vector<56x490xf32> to vector<8x352xf32>
    %37 = arith.addf %35, %36 : vector<8x352xf32>
    %38 = vector.extract_strided_slice %31 {offsets = [24, 69], sizes = [8, 352], strides = [1, 1]} : vector<56x490xf32> to vector<8x352xf32>
    %39 = arith.addf %37, %38 : vector<8x352xf32>
    %40 = vector.extract_strided_slice %31 {offsets = [32, 70], sizes = [8, 352], strides = [1, 1]} : vector<56x490xf32> to vector<8x352xf32>
    %41 = arith.addf %39, %40 : vector<8x352xf32>
    %42 = vector.extract_strided_slice %31 {offsets = [40, 71], sizes = [8, 352], strides = [1, 1]} : vector<56x490xf32> to vector<8x352xf32>
    %43 = arith.addf %41, %42 : vector<8x352xf32>
    %44 = vector.extract_strided_slice %31 {offsets = [48, 72], sizes = [8, 352], strides = [1, 1]} : vector<56x490xf32> to vector<8x352xf32>
    %45 = arith.addf %43, %44 : vector<8x352xf32>
    %c128 = arith.constant 128 : index
    %c0_12 = arith.constant 0 : index
    %46 = vector.load %arg3[%c128, %c0_12] : memref<200x4xbf16, #tpu.memory_space<vmem>>, vector<24x4xbf16>
    %cst_13 = arith.constant dense<0.000000e+00> : vector<24x490xf32>
    %47 = tpu.matmul %46, %4, %cst_13 {dimension_numbers = #tpu.dot_dimension_numbers<[1], [0], [0], [1], [0, 0, 1, 1], [], []>} : vector<24x4xbf16>, vector<4x490xbf16>, vector<24x490xf32> -> vector<24x490xf32>
    %48 = vector.extract_strided_slice %47 {offsets = [0, 90], sizes = [8, 352], strides = [1, 1]} : vector<24x490xf32> to vector<8x352xf32>
    %49 = arith.addf %45, %48 : vector<8x352xf32>
    %50 = vector.extract_strided_slice %47 {offsets = [8, 91], sizes = [8, 352], strides = [1, 1]} : vector<24x490xf32> to vector<8x352xf32>
    %51 = arith.addf %49, %50 : vector<8x352xf32>
    %52 = vector.extract_strided_slice %47 {offsets = [16, 92], sizes = [8, 352], strides = [1, 1]} : vector<24x490xf32> to vector<8x352xf32>
    %53 = arith.addf %51, %52 : vector<8x352xf32>
    %c152 = arith.constant 152 : index
    %c0_14 = arith.constant 0 : index
    %54 = vector.load %arg3[%c152, %c0_14] : memref<200x4xbf16, #tpu.memory_space<vmem>>, vector<24x4xbf16>
    %cst_15 = arith.constant dense<0.000000e+00> : vector<24x490xf32>
    %55 = tpu.matmul %54, %4, %cst_15 {dimension_numbers = #tpu.dot_dimension_numbers<[1], [0], [0], [1], [0, 0, 1, 1], [], []>} : vector<24x4xbf16>, vector<4x490xbf16>, vector<24x490xf32> -> vector<24x490xf32>
    %56 = vector.extract_strided_slice %55 {offsets = [0, 111], sizes = [8, 352], strides = [1, 1]} : vector<24x490xf32> to vector<8x352xf32>
    %57 = arith.addf %53, %56 : vector<8x352xf32>
    %58 = vector.extract_strided_slice %55 {offsets = [8, 113], sizes = [8, 352], strides = [1, 1]} : vector<24x490xf32> to vector<8x352xf32>
    %59 = arith.addf %57, %58 : vector<8x352xf32>
    %60 = vector.extract_strided_slice %55 {offsets = [16, 115], sizes = [8, 352], strides = [1, 1]} : vector<24x490xf32> to vector<8x352xf32>
    %61 = arith.addf %59, %60 : vector<8x352xf32>
    %c176 = arith.constant 176 : index
    %c0_16 = arith.constant 0 : index
    %62 = vector.load %arg3[%c176, %c0_16] : memref<200x4xbf16, #tpu.memory_space<vmem>>, vector<24x4xbf16>
    %cst_17 = arith.constant dense<0.000000e+00> : vector<24x490xf32>
    %63 = tpu.matmul %62, %4, %cst_17 {dimension_numbers = #tpu.dot_dimension_numbers<[1], [0], [0], [1], [0, 0, 1, 1], [], []>} : vector<24x4xbf16>, vector<4x490xbf16>, vector<24x490xf32> -> vector<24x490xf32>
    %64 = vector.extract_strided_slice %63 {offsets = [0, 132], sizes = [8, 352], strides = [1, 1]} : vector<24x490xf32> to vector<8x352xf32>
    %65 = arith.addf %61, %64 : vector<8x352xf32>
    %66 = vector.extract_strided_slice %63 {offsets = [8, 135], sizes = [8, 352], strides = [1, 1]} : vector<24x490xf32> to vector<8x352xf32>
    %67 = arith.addf %65, %66 : vector<8x352xf32>
    %68 = vector.extract_strided_slice %63 {offsets = [16, 138], sizes = [8, 352], strides = [1, 1]} : vector<24x490xf32> to vector<8x352xf32>
    %69 = arith.addf %67, %68 : vector<8x352xf32>
    %c0_18 = arith.constant 0 : index
    %c0_19 = arith.constant 0 : index
    %c0_20 = arith.constant 0 : index
    %70 = vector.load %arg5[%c0_18, %c0_19, %c0_20] : memref<1x8x352xf32, #tpu.memory_space<vmem>>, vector<1x8x352xf32>
    %71 = vector.shape_cast %70 : vector<1x8x352xf32> to vector<8x352xf32>
    %72 = arith.addf %71, %69 : vector<8x352xf32>
    %c0_21 = arith.constant 0 : index
    %c0_22 = arith.constant 0 : index
    %c0_23 = arith.constant 0 : index
    %73 = vector.load %arg5[%c0_21, %c0_22, %c0_23] : memref<1x8x352xf32, #tpu.memory_space<vmem>>, vector<1x8x352xf32>
    %74 = vector.shape_cast %73 : vector<1x8x352xf32> to vector<8x352xf32>
    %75 = vector.shape_cast %72 : vector<8x352xf32> to vector<1x8x352xf32>
    tpu.vector_store %arg5[%c0_21, %c0_22, %c0_23], %75 {strides = array<i32>} : memref<1x8x352xf32, #tpu.memory_space<vmem>>, vector<1x8x352xf32>,
    return
  }
  func.func @transform_0(%arg0: i32, %arg1: i32) -> (i32, i32, i32) {
    %c0_i32 = arith.constant 0 : i32
    %c0_i32_0 = arith.constant 0 : i32
    return %arg0, %arg1, %c0_i32 : i32, i32, i32
  }
  func.func @transform_1(%arg0: i32, %arg1: i32) -> (i32, i32) {
    %c0_i32 = arith.constant 0 : i32
    %c0_i32_0 = arith.constant 0 : i32
    return %c0_i32, %arg1 : i32, i32
  }
  func.func @transform_2(%arg0: i32, %arg1: i32) -> (i32, i32) {
    %c0_i32 = arith.constant 0 : i32
    %c0_i32_0 = arith.constant 0 : i32
    %c0_i32_1 = arith.constant 0 : i32
    return %c0_i32, %c0_i32_0 : i32, i32
  }
  func.func @transform_3(%arg0: i32, %arg1: i32) -> (i32, i32, i32) {
    %c0_i32 = arith.constant 0 : i32
    %c0_i32_0 = arith.constant 0 : i32
    %c0_i32_1 = arith.constant 0 : i32
    return %arg0, %c0_i32, %c0_i32_0 : i32, i32, i32
  }
}

</mosaic_0001>

<llo_original>
// kernel: tpu_custom_call.1
$region0: #{tpu_custom_call.1}
  #allocation0 [shape = 'u32[]', space=smem, size = 0x4, offset = 0x4, fixed_abs, tag = 'smem constant byte address 0x4 - core index']
  #allocation1 [shape = 'u32[144,128]{1,0:T(1,128)}', space=vmem, size = 0x12000, scoped, tag = 'internal scratch']
  %s0 = inlined_call_operand.vmem [shape: bf16[2,4,490], index: 0, kind: input, shape index: {}]
  %s1 = inlined_call_operand.vmem [shape: bf16[200,4], index: 1, kind: input, shape index: {}]
  %s2 = inlined_call_operand.vmem [shape: f32[8,1], index: 2, kind: input, shape index: {}]
  %s3 = inlined_call_operand.hbm [shape: f32[2,8,352], index: 3, kind: output, shape index: {}]
  %s4 = sld [smem:[#allocation0]]
  $region49: #{tpu_custom_call.1} parent=0
    _
  %s6 = ssub.s32 1, %s4
  %s7 = scalar_select 0, %s6, %s4
  $region1: #{tpu_custom_call.1} parent=0
    #allocation2 [shape = 'u8[24576]{0}', space=vmem, size = 0x6000, scoped, tag = 'output window, operand 0']
    #allocation3 [shape = 's32[2]{0}', space=sflag, size = 0x8, scoped, tag = 'scoped memory for tpu_custom_call.1']
    %8 = vsyncpa [#allocation3], 0
    %s9 = scalar_lea.sflag [#allocation3], 1
    %10 = vsyncpa %s9, 0
    loop: start=0, step=1, limit=4
    $region2: #{tpu_custom_call.1} parent=1 // loop_pre_header
      _
    $region3: #{tpu_custom_call.1} parent=1 // loop_header
      %s12 = sphi 0, %s16
      %p13 = scmp.ge.s32.totalorder %s12, 4
      %s19 = sphi 0, %s31
      %s20 = sphi 0, %s27
      %s21 = sphi 0, %s19
      %s22 = sphi 0, %s20
      %s23 = sphi 0, %s21
      %s24 = sphi 0, %s22
      %s36 = sphi 0, %s38
      %s39 = sphi 0, %s36
      %s40 = sphi 0, %s39
      %s56 = sphi 0, %s40
      %s62 = sphi 0, %s64
      %s65 = sphi 0, %s62
      %s66 = sphi 0, %s65
      %s82 = sphi 0, %s66
      %s86 = sphi 0, %s86
      %s88 = sphi 0, %s86
      %s89 = sphi 0, %s88
      %s103 = sphi 0, %s89
      %s109 = sphi 0, %s111
      %s112 = sphi 0, %s109
      %s113 = sphi 0, %s112
      %s129 = sphi 0, %s113
    $region4: #{tpu_custom_call.1} parent=1 // loop_header_branch
      %15 = sbr.rel (%p13) target = $region8
    $region5: #{tpu_custom_call.1} parent=1 // loop_body
      %s17 = ssub.s32 %s12, 1
      %s18 = ssub.s32 %s12, 2
      %s25 = sadd.s32 1, %s20
      %p26 = scmp.ge.s32.totalorder %s25, 1
      %s27 = scalar_select %p26, 0, %s25
      %s28 = sadd.s32 1, %s19
      %s29 = scalar_select %p26, %s28, %s19
      %p30 = scmp.ge.s32.totalorder %s29, 2
      %s31 = scalar_select %p30, 0, %s29
      %s32 = ssub.s32 %s19, %s31
      %s33 = ssub.s32 %s20, %s27
      %s34 = sor.u32 %s32, %s33
      %p35 = scmp.eq.s32.totalorder %s34, 0
      %s37 = sadd.s32 %s36, 1
      %s38 = scalar_select %p35, %s36, %s37
      %p41 = pneg %p35
      %p42 = scmp.eq.s32.totalorder %s12, 1
      %p43 = por %p41, %p42
      %p44 = scmp.ne.s32.totalorder %s36, %s39
      %p45 = scmp.eq.s32.totalorder %s12, 0
      %p46 = por %p44, %p45
      %p47 = scmp.ne.s32.totalorder %s36, %s39
      %p48 = scmp.eq.s32.totalorder %s17, 1
      %p49 = por %p47, %p48
      %p50 = scmp.ne.s32.totalorder %s39, %s40
      %p51 = scmp.eq.s32.totalorder %s17, 0
      %p52 = por %p50, %p51
      %p53 = scmp.ne.s32.totalorder %s39, %s40
      %p54 = scmp.eq.s32.totalorder %s18, 1
      %p55 = por %p53, %p54
      %p57 = scmp.ne.s32.totalorder %s40, %s56
      %p58 = scmp.eq.s32.totalorder %s18, 0
      %p59 = por %p57, %p58
      %s60 = ssub.s32 %s20, %s27
      %p61 = scmp.eq.s32.totalorder %s60, 0
      %s63 = sadd.s32 %s62, 1
      %s64 = scalar_select %p61, %s62, %s63
      %p67 = pneg %p61
      %p68 = scmp.eq.s32.totalorder %s12, 1
      %p69 = por %p67, %p68
      %p70 = scmp.ne.s32.totalorder %s62, %s65
      %p71 = scmp.eq.s32.totalorder %s12, 0
      %p72 = por %p70, %p71
      %p73 = scmp.ne.s32.totalorder %s62, %s65
      %p74 = scmp.eq.s32.totalorder %s17, 1
      %p75 = por %p73, %p74
      %p76 = scmp.ne.s32.totalorder %s65, %s66
      %p77 = scmp.eq.s32.totalorder %s17, 0
      %p78 = por %p76, %p77
      %p79 = scmp.ne.s32.totalorder %s65, %s66
      %p80 = scmp.eq.s32.totalorder %s18, 1
      %p81 = por %p79, %p80
      %p83 = scmp.ne.s32.totalorder %s66, %s82
      %p84 = scmp.eq.s32.totalorder %s18, 0
      %p85 = por %p83, %p84
      %s87 = sadd.s32 %s86, 1
      %p90 = scmp.eq.s32.totalorder %s12, 1
      %p91 = scmp.ne.s32.totalorder %s86, %s88
      %p92 = scmp.eq.s32.totalorder %s12, 0
      %p93 = por %p91, %p92
      %p94 = scmp.ne.s32.totalorder %s86, %s88
      %p95 = scmp.eq.s32.totalorder %s17, 1
      %p96 = por %p94, %p95
      %p97 = scmp.ne.s32.totalorder %s88, %s89
      %p98 = scmp.eq.s32.totalorder %s17, 0
      %p99 = por %p97, %p98
      %p100 = scmp.ne.s32.totalorder %s88, %s89
      %p101 = scmp.eq.s32.totalorder %s18, 1
      %p102 = por %p100, %p101
      %p104 = scmp.ne.s32.totalorder %s89, %s103
      %p105 = scmp.eq.s32.totalorder %s18, 0
      %p106 = por %p104, %p105
      %s107 = ssub.s32 %s19, %s31
      %p108 = scmp.eq.s32.totalorder %s107, 0
      %s110 = sadd.s32 %s109, 1
      %s111 = scalar_select %p108, %s109, %s110
      %p114 = pneg %p108
      %p115 = scmp.eq.s32.totalorder %s12, 1
      %p116 = por %p114, %p115
      %p117 = scmp.ne.s32.totalorder %s109, %s112
      %p118 = scmp.eq.s32.totalorder %s12, 0
      %p119 = por %p117, %p118
      %p120 = scmp.ne.s32.totalorder %s109, %s112
      %p121 = scmp.eq.s32.totalorder %s17, 1
      %p122 = por %p120, %p121
      %p123 = scmp.ne.s32.totalorder %s112, %s113
      %p124 = scmp.eq.s32.totalorder %s17, 0
      %p125 = por %p123, %p124
      %p126 = scmp.ne.s32.totalorder %s112, %s113
      %p127 = scmp.eq.s32.totalorder %s18, 1
      %p128 = por %p126, %p127
      %p130 = scmp.ne.s32.totalorder %s113, %s129
      %p131 = scmp.eq.s32.totalorder %s18, 0
      %p132 = por %p130, %p131
      %p133 = scmp.le.s32.totalorder 1, %s12
      %p134 = scmp.lt.s32.totalorder %s12, 3
      %p135 = pnand %p133, %p134
      %p136 = pneg %p135
      // Predicated region
      $region9: #{tpu_custom_call.1} parent=5 // pred_check
        _
      $region10: #{tpu_custom_call.1} parent=5 // pred_check_branch
        %138 = sbr.rel (%p135) target = $region12
      $region11: #{tpu_custom_call.1} parent=5 // pred_region
        %s139 = ssub.s32 %s12, 1
        // Predicated region
        $region13: #{tpu_custom_call.1} parent=11 // pred_check
          %p140 = pneg %p78
        $region14: #{tpu_custom_call.1} parent=11 // pred_check_branch
          %142 = sbr.rel (%p140) target = $region16
        $region15: #{tpu_custom_call.1} parent=11 // pred_region
          %p143 = scmp.lt.s32.totalorder %s22, 0
          %s144 = scalar_select %p143, %s22, 0
          %s145 = smul.addr %s144, 4
          %s146 = scalar_lea.vmem %s1, %s145
        $region16: #{tpu_custom_call.1} parent=11 // pred_fallthru
          _
        // Predicated region
        $region17: #{tpu_custom_call.1} parent=11 // pred_check
          %p147 = pneg %p99
        $region18: #{tpu_custom_call.1} parent=11 // pred_check_branch
          %149 = sbr.rel (%p147) target = $region20
        $region19: #{tpu_custom_call.1} parent=11 // pred_region
          _
        $region20: #{tpu_custom_call.1} parent=11 // pred_fallthru
          _
      $region12: #{tpu_custom_call.1} parent=5 // pred_fallthru
        _
      %p150 = scmp.lt.s32.totalorder %s12, 2
      // Predicated region
      $region21: #{tpu_custom_call.1} parent=5 // pred_check
        %p151 = pneg %p150
      $region22: #{tpu_custom_call.1} parent=5 // pred_check_branch
        %153 = sbr.rel (%p151) target = $region24
      $region23: #{tpu_custom_call.1} parent=5 // pred_region
        // Predicated region
        $region25: #{tpu_custom_call.1} parent=23 // pred_check
          %p154 = pneg %p46
        $region26: #{tpu_custom_call.1} parent=23 // pred_check_branch
          %156 = sbr.rel (%p154) target = $region28
        $region27: #{tpu_custom_call.1} parent=23 // pred_region
          %p157 = scmp.lt.s32.totalorder %s19, 1
          %s158 = scalar_select %p157, %s19, 1
          %p159 = scmp.lt.s32.totalorder %s20, 0
          %s160 = scalar_select %p159, %s20, 0
          %s161 = smul.addr %s160, 4
          %s162 = smul.addr %s158, 4
          %s163 = sadd.s32 %s161, %s162
          %s164 = smul.addr %s163, 2
          %s165 = scalar_lea.vmem %s0, %s164
        $region28: #{tpu_custom_call.1} parent=23 // pred_fallthru
          _
      $region24: #{tpu_custom_call.1} parent=5 // pred_fallthru
        _
      %p166 = scmp.le.s32.totalorder 1, %s12
      %p167 = scmp.lt.s32.totalorder %s12, 3
      %p168 = pnand %p166, %p167
      %p169 = pneg %p168
      // Predicated region
      $region29: #{tpu_custom_call.1} parent=5 // pred_check
        _
      $region30: #{tpu_custom_call.1} parent=5 // pred_check_branch
        %171 = sbr.rel (%p168) target = $region32
      $region31: #{tpu_custom_call.1} parent=5 // pred_region
        %s172 = ssub.s32 %s12, 1
        %p173 = scmp.lt.s32.totalorder %s21, 1
        %s174 = scalar_select %p173, %s21, 1
        %p175 = scmp.lt.s32.totalorder %s22, 0
        %s176 = scalar_select %p175, %s22, 0
        %s177 = smul.addr %s176, 4
        %s178 = smul.addr %s174, 4
        %s179 = sadd.s32 %s177, %s178
        %s180 = smul.addr %s179, 2
        %s181 = scalar_lea.vmem %s0, %s180
        %p182 = pneg %p52
        %p183 = pneg %p49
        %p184 = scmp.lt.s32.totalorder %s22, 0
        %s185 = scalar_select %p184, %s22, 0
        %s186 = smul.addr %s185, 4
        %s187 = scalar_lea.vmem %s1, %s186
        %p188 = pneg %p78
        %p189 = pneg %p75
        %p190 = pneg %p99
        %p191 = pneg %p96
        %p192 = pneg %p125
        %p193 = pneg %p122
        %s194 = sand.u32 %s112, 1
        %s195 = scalar_lea.sflag [#allocation3], %s194
        %s196 = sand.u32 %s112, 1
        %s197 = smul.addr %s196, 24
        %s198 = scalar_lea.vmem [#allocation2], %s197
        %p199 = scmp.lt.s32.totalorder %s21, 1
        %s200 = scalar_select %p199, %s21, 1
        %p201 = scmp.lt.s32.totalorder %s22, 0
        %s202 = scalar_select %p201, %s22, 0
        %s203 = smul.addr %s202, 4
        %s204 = smul.addr %s200, 4
        %s205 = sadd.s32 %s203, %s204
        %s206 = smul.addr %s205, 2
        %s207 = scalar_lea.vmem %s0, %s206
        %p208 = scmp.lt.s32.totalorder %s22, 0
        %s209 = scalar_select %p208, %s22, 0
        %s210 = smul.addr %s209, 4
        %s211 = scalar_lea.vmem %s1, %s210
        %p213 = scmp.eq.s32.totalorder %s22, 0
        // Predicated region
        $region33: #{tpu_custom_call.1} parent=31 // pred_check
          %p214 = pneg %p213
        $region34: #{tpu_custom_call.1} parent=31 // pred_check_branch
          %216 = sbr.rel (%p214) target = $region36
        $region35: #{tpu_custom_call.1} parent=31 // pred_region
          %v217 = vld [vmem:[%s2] sm:$0xff]
          %219 = vset.pattern.permute.xlu0 0
          %220 = vperm.xlu0 %219, %v217
          %v221 = vpop.permute.xlu0 %220
          %223 = vst [vmem:[%s198] sm:$0xff] %v221
          %224 = vst [vmem:[%s198 + $0x8] sm:$0xff] %v221
          %vm225 = vcmask 785408
          %226 = vst.msk [vmem:[%s198 + $0x10] sm:$0xff] %vm225, %v221
        $region36: #{tpu_custom_call.1} parent=31 // pred_fallthru
          _
        %v227 = vld [vmem:[%s207] sm:$0xff]
        %v228 = vld [vmem:[%s211] sm:$0xf]
        %v229 = vld [vmem:[%s211 + $0x4] sm:$0xf]
        %v230 = vld [vmem:[%s211 + $0x8] sm:$0xf]
        %v234 = vunpack.c.l.b16 %v228
        %v235 = vunpack.c.l.b16 %v229
        %v236 = vunpack.c.l.b16 %v230
        %v237 = vpack.c.b16 %v235, %v234
        %v238 = vpack.c.b16 %v236, %v236
        %v240 = vcombine.high %v227, %v227
        %v242 = vunpack.c.l.s4 1983009808
        %v243 = vunpack.c.0.s8 %v242
        %v244 = vlaneseq
        %v245 = vshrl.u32 %v244, 7
        %v246 = vsub.s32 %v243, %v245
        %v247 = vrot.slane %v227, %v246
        %v249 = vunpack.c.l.s4 1983009808
        %v250 = vunpack.c.0.s8 %v249
        %v251 = vlaneseq
        %v252 = vshrl.u32 %v251, 7
        %v253 = vsub.s32 %v250, %v252
        %v254 = vrot.slane %v240, %v253
        %v255 = vcombine.high %v247, %v247
        %v256 = vcombine.high %v254, %v254
        %vm257 = vcmask 31744
        %v259 = vsel %vm257, %v237, 0
        %v262 = vsel %vm257, %v238, 0
        %vm264 = vcmask 1041408
        %v266 = vsel %vm264, %v247, 0
        %v269 = vsel %vm264, %v255, 0
        %v272 = vsel %vm264, %v254, 0
        %v275 = vsel %vm264, %v256, 0
        %277 = vmatprep.subr.bf16.mxu0 0
        %278 = vmatpush1.bf16.msra.mxu0 0
        %279 = vmatprep.subr.bf16.mxu0 0
        %280 = vmatpush1.bf16.msra.mxu0 0
        %281 = vmatprep.subr.bf16.mxu0 0
        %282 = vmatpush1.bf16.msra.mxu0 0
        %283 = vmatprep.subr.bf16.mxu0 0
        %284 = vmatpush1.bf16.msra.mxu0 0
        %285 = vmatprep.subr.bf16.mxu0 0
        %286 = vmatpush1.bf16.msra.mxu0 0
        %287 = vmatprep.subr.bf16.mxu0 0
        %288 = vmatpush1.bf16.msra.mxu0 0
        %289 = vmatprep.subr.bf16.mxu0 0
        %290 = vmatpush1.bf16.msra.mxu0 0
        %291 = vmatprep.subr.bf16.mxu0 %v269
        %292 = vmatpush1.bf16.msra.mxu0 %v266
        %293 = vmatprep.subr.bf16.mxu0 0
        %294 = vmatpush2.bf16.msra.mxu0 0
        %295 = vmatprep.subr.bf16.mxu0 0
        %296 = vmatpush2.bf16.msra.mxu0 0
        %297 = vmatprep.subr.bf16.mxu0 0
        %298 = vmatpush2.bf16.msra.mxu0 0
        %299 = vmatprep.subr.bf16.mxu0 0
        %300 = vmatpush2.bf16.msra.mxu0 0
        %301 = vmatprep.subr.bf16.mxu0 0
        %302 = vmatpush2.bf16.msra.mxu0 0
        %303 = vmatprep.subr.bf16.mxu0 0
        %304 = vmatpush2.bf16.msra.mxu0 0
        %305 = vmatprep.subr.bf16.mxu0 0
        %306 = vmatpush2.bf16.msra.mxu0 0
        %307 = vmatprep.subr.bf16.mxu0 0
        %308 = vmatpush2.bf16.msra.mxu0 0
        %309 = vmatprep.mubr.bf16.mxu0 0
        %310 = vmatmul.mubr.bf16.gmra.mxu0 %v259
        %v311 = vpop.f32.mrf.mxu0
        %v312 = vadd.f32 0.0, %v311
        %v313 = vpop.f32.mrf.mxu0
        %v314 = vadd.f32 0.0, %v313
        %v315 = vpop.f32.mrf.mxu0
        %v316 = vadd.f32 0.0, %v315
        %v317 = vpop.f32.mrf.mxu0
        %v318 = vadd.f32 0.0, %v317
        %319 = vmatprep.mubr.bf16.mxu0 0
        %320 = vmatmul.mubr.bf16.gmra.mxu0 %v262
        %v321 = vpop.f32.mrf.mxu0
        %v322 = vadd.f32 0.0, %v321
        %v323 = vpop.f32.mrf.mxu0
        %v324 = vadd.f32 0.0, %v323
        %v325 = vpop.f32.mrf.mxu0
        %v326 = vpop.f32.mrf.mxu0
        %327 = vdwg.mxu0
        %328 = vmatprep.subr.bf16.mxu0 0
        %329 = vmatpush1.bf16.msra.mxu0 0
        %330 = vmatprep.subr.bf16.mxu0 0
        %331 = vmatpush1.bf16.msra.mxu0 0
        %332 = vmatprep.subr.bf16.mxu0 0
        %333 = vmatpush1.bf16.msra.mxu0 0
        %334 = vmatprep.subr.bf16.mxu0 0
        %335 = vmatpush1.bf16.msra.mxu0 0
        %336 = vmatprep.subr.bf16.mxu0 0
        %337 = vmatpush1.bf16.msra.mxu0 0
        %338 = vmatprep.subr.bf16.mxu0 0
        %339 = vmatpush1.bf16.msra.mxu0 0
        %340 = vmatprep.subr.bf16.mxu0 0
        %341 = vmatpush1.bf16.msra.mxu0 0
        %342 = vmatprep.subr.bf16.mxu0 %v275
        %343 = vmatpush1.bf16.msra.mxu0 %v272
        %344 = vmatprep.subr.bf16.mxu0 0
        %345 = vmatpush2.bf16.msra.mxu0 0
        %346 = vmatprep.subr.bf16.mxu0 0
        %347 = vmatpush2.bf16.msra.mxu0 0
        %348 = vmatprep.subr.bf16.mxu0 0
        %349 = vmatpush2.bf16.msra.mxu0 0
        %350 = vmatprep.subr.bf16.mxu0 0
        %351 = vmatpush2.bf16.msra.mxu0 0
        %352 = vmatprep.subr.bf16.mxu0 0
        %353 = vmatpush2.bf16.msra.mxu0 0
        %354 = vmatprep.subr.bf16.mxu0 0
        %355 = vmatpush2.bf16.msra.mxu0 0
        %356 = vmatprep.subr.bf16.mxu0 0
        %357 = vmatpush2.bf16.msra.mxu0 0
        %358 = vmatprep.subr.bf16.mxu0 0
        %359 = vmatpush2.bf16.msra.mxu0 0
        %360 = vmatprep.mubr.bf16.mxu0 0
        %361 = vmatmul.mubr.bf16.gmra.mxu0 %v259
        %v362 = vpop.f32.mrf.mxu0
        %v363 = vadd.f32 0.0, %v362
        %v364 = vpop.f32.mrf.mxu0
        %v365 = vpop.f32.mrf.mxu0
        %v366 = vadd.f32 0.0, %v365
        %v367 = vpop.f32.mrf.mxu0
        %368 = vmatprep.mubr.bf16.mxu0 0
        %369 = vmatmul.mubr.bf16.gmra.mxu0 %v262
        %v370 = vpop.f32.mrf.mxu0
        %v371 = vadd.f32 0.0, %v370
        %v372 = vpop.f32.mrf.mxu0
        %v373 = vpop.f32.mrf.mxu0
        %v374 = vpop.f32.mrf.mxu0
        %375 = vdwg.mxu0
        %v376 = vadd.f32 %v312, 0.0
        %v377 = vadd.f32 %v314, 0.0
        %v378 = vadd.f32 %v363, 0.0
        %382 = vrot.lane.b32.xlu0 %v316, 125
        %v383 = vpop.permute.xlu0 %382
        %384 = vrot.lane.b32.xlu0 %v318, 125
        %v385 = vpop.permute.xlu0 %384
        %386 = vrot.lane.b32.xlu0 %v366, 125
        %v387 = vpop.permute.xlu0 %386
        %vm388 = vcmask 1022976
        %v389 = vsel %vm388, %v383, %v385
        %v390 = vsel %vm388, %v385, %v387
        %v394 = vadd.f32 %v376, %v389
        %v395 = vadd.f32 %v377, %v390
        %v396 = vadd.f32 %v378, %v387
        %400 = vrot.lane.b32.xlu0 %v322, 122
        %v401 = vpop.permute.xlu0 %400
        %402 = vrot.lane.b32.xlu0 %v324, 122
        %v403 = vpop.permute.xlu0 %402
        %404 = vrot.lane.b32.xlu0 %v371, 122
        %v405 = vpop.permute.xlu0 %404
        %vm406 = vcmask 998400
        %v407 = vsel %vm406, %v401, %v403
        %v408 = vsel %vm406, %v403, %v405
        %v412 = vadd.f32 %v394, %v407
        %v413 = vadd.f32 %v395, %v408
        %v414 = vadd.f32 %v396, %v405
        %v415 = vld [vmem:[%s211 + $0xc] sm:$0xf]
        %v416 = vld [vmem:[%s211 + $0x10] sm:$0xf]
        %v417 = vld [vmem:[%s211 + $0x14] sm:$0xf]
        %v421 = vunpack.c.l.b16 %v415
        %v422 = vunpack.c.l.b16 %v416
        %v423 = vunpack.c.l.b16 %v417
        %v424 = vpack.c.b16 %v422, %v421
        %v425 = vpack.c.b16 %v423, %v423
        %v427 = vsel %vm257, %v424, 0
        %v430 = vsel %vm257, %v425, 0
        %432 = vmatprep.subr.bf16.mxu0 0
        %433 = vmatpush1.bf16.msra.mxu0 0
        %434 = vmatprep.subr.bf16.mxu0 0
        %435 = vmatpush1.bf16.msra.mxu0 0
        %436 = vmatprep.subr.bf16.mxu0 0
        %437 = vmatpush1.bf16.msra.mxu0 0
        %438 = vmatprep.subr.bf16.mxu0 0
        %439 = vmatpush1.bf16.msra.mxu0 0
        %440 = vmatprep.subr.bf16.mxu0 0
        %441 = vmatpush1.bf16.msra.mxu0 0
        %442 = vmatprep.subr.bf16.mxu0 0
        %443 = vmatpush1.bf16.msra.mxu0 0
        %444 = vmatprep.subr.bf16.mxu0 0
        %445 = vmatpush1.bf16.msra.mxu0 0
        %446 = vmatprep.subr.bf16.mxu0 %v269
        %447 = vmatpush1.bf16.msra.mxu0 %v266
        %448 = vmatprep.subr.bf16.mxu0 0
        %449 = vmatpush2.bf16.msra.mxu0 0
        %450 = vmatprep.subr.bf16.mxu0 0
        %451 = vmatpush2.bf16.msra.mxu0 0
        %452 = vmatprep.subr.bf16.mxu0 0
        %453 = vmatpush2.bf16.msra.mxu0 0
        %454 = vmatprep.subr.bf16.mxu0 0
        %455 = vmatpush2.bf16.msra.mxu0 0
        %456 = vmatprep.subr.bf16.mxu0 0
        %457 = vmatpush2.bf16.msra.mxu0 0
        %458 = vmatprep.subr.bf16.mxu0 0
        %459 = vmatpush2.bf16.msra.mxu0 0
        %460 = vmatprep.subr.bf16.mxu0 0
        %461 = vmatpush2.bf16.msra.mxu0 0
        %462 = vmatprep.subr.bf16.mxu0 0
        %463 = vmatpush2.bf16.msra.mxu0 0
        %464 = vmatprep.mubr.bf16.mxu0 0
        %465 = vmatmul.mubr.bf16.gmra.mxu0 %v427
        %v466 = vpop.f32.mrf.mxu0
        %v467 = vadd.f32 0.0, %v466
        %v468 = vpop.f32.mrf.mxu0
        %v469 = vadd.f32 0.0, %v468
        %v470 = vpop.f32.mrf.mxu0
        %v471 = vadd.f32 0.0, %v470
        %v472 = vpop.f32.mrf.mxu0
        %v473 = vadd.f32 0.0, %v472
        %474 = vmatprep.mubr.bf16.mxu0 0
        %475 = vmatmul.mubr.bf16.gmra.mxu0 %v430
        %v476 = vpop.f32.mrf.mxu0
        %v477 = vadd.f32 0.0, %v476
        %v478 = vpop.f32.mrf.mxu0
        %v479 = vadd.f32 0.0, %v478
        %v480 = vpop.f32.mrf.mxu0
        %v481 = vpop.f32.mrf.mxu0
        %482 = vdwg.mxu0
        %483 = vmatprep.subr.bf16.mxu0 0
        %484 = vmatpush1.bf16.msra.mxu0 0
        %485 = vmatprep.subr.bf16.mxu0 0
        %486 = vmatpush1.bf16.msra.mxu0 0
        %487 = vmatprep.subr.bf16.mxu0 0
        %488 = vmatpush1.bf16.msra.mxu0 0
        %489 = vmatprep.subr.bf16.mxu0 0
        %490 = vmatpush1.bf16.msra.mxu0 0
        %491 = vmatprep.subr.bf16.mxu0 0
        %492 = vmatpush1.bf16.msra.mxu0 0
        %493 = vmatprep.subr.bf16.mxu0 0
        %494 = vmatpush1.bf16.msra.mxu0 0
        %495 = vmatprep.subr.bf16.mxu0 0
        %496 = vmatpush1.bf16.msra.mxu0 0
        %497 = vmatprep.subr.bf16.mxu0 %v275
        %498 = vmatpush1.bf16.msra.mxu0 %v272
        %499 = vmatprep.subr.bf16.mxu0 0
        %500 = vmatpush2.bf16.msra.mxu0 0
        %501 = vmatprep.subr.bf16.mxu0 0
        %502 = vmatpush2.bf16.msra.mxu0 0
        %503 = vmatprep.subr.bf16.mxu0 0
        %504 = vmatpush2.bf16.msra.mxu0 0
        %505 = vmatprep.subr.bf16.mxu0 0
        %506 = vmatpush2.bf16.msra.mxu0 0
        %507 = vmatprep.subr.bf16.mxu0 0
        %508 = vmatpush2.bf16.msra.mxu0 0
        %509 = vmatprep.subr.bf16.mxu0 0
        %510 = vmatpush2.bf16.msra.mxu0 0
        %511 = vmatprep.subr.bf16.mxu0 0
        %512 = vmatpush2.bf16.msra.mxu0 0
        %513 = vmatprep.subr.bf16.mxu0 0
        %514 = vmatpush2.bf16.msra.mxu0 0
        %515 = vmatprep.mubr.bf16.mxu0 0
        %516 = vmatmul.mubr.bf16.gmra.mxu0 %v427
        %v517 = vpop.f32.mrf.mxu0
        %v518 = vadd.f32 0.0, %v517
        %v519 = vpop.f32.mrf.mxu0
        %v520 = vpop.f32.mrf.mxu0
        %v521 = vadd.f32 0.0, %v520
        %v522 = vpop.f32.mrf.mxu0
        %523 = vmatprep.mubr.bf16.mxu0 0
        %524 = vmatmul.mubr.bf16.gmra.mxu0 %v430
        %v525 = vpop.f32.mrf.mxu0
        %v526 = vadd.f32 0.0, %v525
        %v527 = vpop.f32.mrf.mxu0
        %v528 = vpop.f32.mrf.mxu0
        %v529 = vpop.f32.mrf.mxu0
        %530 = vdwg.mxu0
        %534 = vrot.lane.b32.xlu0 %v467, 105
        %v535 = vpop.permute.xlu0 %534
        %536 = vrot.lane.b32.xlu0 %v469, 105
        %v537 = vpop.permute.xlu0 %536
        %538 = vrot.lane.b32.xlu0 %v518, 105
        %v539 = vpop.permute.xlu0 %538
        %vm540 = vcmask 859136
        %v541 = vsel %vm540, %v535, %v537
        %v542 = vsel %vm540, %v537, %v539
        %v546 = vadd.f32 %v412, %v541
        %v547 = vadd.f32 %v413, %v542
        %v548 = vadd.f32 %v414, %v539
        %552 = vrot.lane.b32.xlu0 %v471, 103
        %v553 = vpop.permute.xlu0 %552
        %554 = vrot.lane.b32.xlu0 %v473, 103
        %v555 = vpop.permute.xlu0 %554
        %556 = vrot.lane.b32.xlu0 %v521, 103
        %v557 = vpop.permute.xlu0 %556
        %vm558 = vcmask 842752
        %v559 = vsel %vm558, %v553, %v555
        %v560 = vsel %vm558, %v555, %v557
        %v564 = vadd.f32 %v546, %v559
        %v565 = vadd.f32 %v547, %v560
        %v566 = vadd.f32 %v548, %v557
        %570 = vrot.lane.b32.xlu0 %v477, 101
        %v571 = vpop.permute.xlu0 %570
        %572 = vrot.lane.b32.xlu0 %v479, 101
        %v573 = vpop.permute.xlu0 %572
        %574 = vrot.lane.b32.xlu0 %v526, 101
        %v575 = vpop.permute.xlu0 %574
        %vm576 = vcmask 826368
        %v577 = vsel %vm576, %v571, %v573
        %v578 = vsel %vm576, %v573, %v575
        %v582 = vadd.f32 %v564, %v577
        %v583 = vadd.f32 %v565, %v578
        %v584 = vadd.f32 %v566, %v575
        %v585 = vld [vmem:[%s211 + $0x18] sm:$0xf]
        %v586 = vld [vmem:[%s211 + $0x1c] sm:$0xf]
        %v587 = vld [vmem:[%s211 + $0x20] sm:$0xf]
        %v591 = vunpack.c.l.b16 %v585
        %v592 = vunpack.c.l.b16 %v586
        %v593 = vunpack.c.l.b16 %v587
        %v594 = vpack.c.b16 %v592, %v591
        %v595 = vpack.c.b16 %v593, %v593
        %v597 = vsel %vm257, %v594, 0
        %v600 = vsel %vm257, %v595, 0
        %602 = vmatprep.subr.bf16.mxu0 0
        %603 = vmatpush1.bf16.msra.mxu0 0
        %604 = vmatprep.subr.bf16.mxu0 0
        %605 = vmatpush1.bf16.msra.mxu0 0
        %606 = vmatprep.subr.bf16.mxu0 0
        %607 = vmatpush1.bf16.msra.mxu0 0
        %608 = vmatprep.subr.bf16.mxu0 0
        %609 = vmatpush1.bf16.msra.mxu0 0
        %610 = vmatprep.subr.bf16.mxu0 0
        %611 = vmatpush1.bf16.msra.mxu0 0
        %612 = vmatprep.subr.bf16.mxu0 0
        %613 = vmatpush1.bf16.msra.mxu0 0
        %614 = vmatprep.subr.bf16.mxu0 0
        %615 = vmatpush1.bf16.msra.mxu0 0
        %616 = vmatprep.subr.bf16.mxu0 %v269
        %617 = vmatpush1.bf16.msra.mxu0 %v266
        %618 = vmatprep.subr.bf16.mxu0 0
        %619 = vmatpush2.bf16.msra.mxu0 0
        %620 = vmatprep.subr.bf16.mxu0 0
        %621 = vmatpush2.bf16.msra.mxu0 0
        %622 = vmatprep.subr.bf16.mxu0 0
        %623 = vmatpush2.bf16.msra.mxu0 0
        %624 = vmatprep.subr.bf16.mxu0 0
        %625 = vmatpush2.bf16.msra.mxu0 0
        %626 = vmatprep.subr.bf16.mxu0 0
        %627 = vmatpush2.bf16.msra.mxu0 0
        %628 = vmatprep.subr.bf16.mxu0 0
        %629 = vmatpush2.bf16.msra.mxu0 0
        %630 = vmatprep.subr.bf16.mxu0 0
        %631 = vmatpush2.bf16.msra.mxu0 0
        %632 = vmatprep.subr.bf16.mxu0 0
        %633 = vmatpush2.bf16.msra.mxu0 0
        %634 = vmatprep.mubr.bf16.mxu0 0
        %635 = vmatmul.mubr.bf16.gmra.mxu0 %v597
        %v636 = vpop.f32.mrf.mxu0
        %v637 = vadd.f32 0.0, %v636
        %v638 = vpop.f32.mrf.mxu0
        %v639 = vadd.f32 0.0, %v638
        %v640 = vpop.f32.mrf.mxu0
        %v641 = vadd.f32 0.0, %v640
        %v642 = vpop.f32.mrf.mxu0
        %v643 = vadd.f32 0.0, %v642
        %644 = vmatprep.mubr.bf16.mxu0 0
        %645 = vmatmul.mubr.bf16.gmra.mxu0 %v600
        %v646 = vpop.f32.mrf.mxu0
        %v647 = vadd.f32 0.0, %v646
        %v648 = vpop.f32.mrf.mxu0
        %v649 = vadd.f32 0.0, %v648
        %v650 = vpop.f32.mrf.mxu0
        %v651 = vpop.f32.mrf.mxu0
        %652 = vdwg.mxu0
        %653 = vmatprep.subr.bf16.mxu0 0
        %654 = vmatpush1.bf16.msra.mxu0 0
        %655 = vmatprep.subr.bf16.mxu0 0
        %656 = vmatpush1.bf16.msra.mxu0 0
        %657 = vmatprep.subr.bf16.mxu0 0
        %658 = vmatpush1.bf16.msra.mxu0 0
        %659 = vmatprep.subr.bf16.mxu0 0
        %660 = vmatpush1.bf16.msra.mxu0 0
        %661 = vmatprep.subr.bf16.mxu0 0
        %662 = vmatpush1.bf16.msra.mxu0 0
        %663 = vmatprep.subr.bf16.mxu0 0
        %664 = vmatpush1.bf16.msra.mxu0 0
        %665 = vmatprep.subr.bf16.mxu0 0
        %666 = vmatpush1.bf16.msra.mxu0 0
        %667 = vmatprep.subr.bf16.mxu0 %v275
        %668 = vmatpush1.bf16.msra.mxu0 %v272
        %669 = vmatprep.subr.bf16.mxu0 0
        %670 = vmatpush2.bf16.msra.mxu0 0
        %671 = vmatprep.subr.bf16.mxu0 0
        %672 = vmatpush2.bf16.msra.mxu0 0
        %673 = vmatprep.subr.bf16.mxu0 0
        %674 = vmatpush2.bf16.msra.mxu0 0
        %675 = vmatprep.subr.bf16.mxu0 0
        %676 = vmatpush2.bf16.msra.mxu0 0
        %677 = vmatprep.subr.bf16.mxu0 0
        %678 = vmatpush2.bf16.msra.mxu0 0
        %679 = vmatprep.subr.bf16.mxu0 0
        %680 = vmatpush2.bf16.msra.mxu0 0
        %681 = vmatprep.subr.bf16.mxu0 0
        %682 = vmatpush2.bf16.msra.mxu0 0
        %683 = vmatprep.subr.bf16.mxu0 0
        %684 = vmatpush2.bf16.msra.mxu0 0
        %685 = vmatprep.mubr.bf16.mxu0 0
        %686 = vmatmul.mubr.bf16.gmra.mxu0 %v597
        %v687 = vpop.f32.mrf.mxu0
        %v688 = vadd.f32 0.0, %v687
        %v689 = vpop.f32.mrf.mxu0
        %v690 = vadd.f32 0.0, %v689
        %v691 = vpop.f32.mrf.mxu0
        %v692 = vadd.f32 0.0, %v691
        %v693 = vpop.f32.mrf.mxu0
        %v694 = vadd.f32 0.0, %v693
        %695 = vmatprep.mubr.bf16.mxu0 0
        %696 = vmatmul.mubr.bf16.gmra.mxu0 %v600
        %v697 = vpop.f32.mrf.mxu0
        %v698 = vadd.f32 0.0, %v697
        %v699 = vpop.f32.mrf.mxu0
        %v700 = vadd.f32 0.0, %v699
        %v701 = vpop.f32.mrf.mxu0
        %v702 = vpop.f32.mrf.mxu0
        %703 = vdwg.mxu0
        %708 = vrot.lane.b32.xlu0 %v637, 82
        %v709 = vpop.permute.xlu0 %708
        %710 = vrot.lane.b32.xlu0 %v639, 82
        %v711 = vpop.permute.xlu0 %710
        %712 = vrot.lane.b32.xlu0 %v688, 82
        %v713 = vpop.permute.xlu0 %712
        %714 = vrot.lane.b32.xlu0 %v690, 82
        %v715 = vpop.permute.xlu0 %714
        %vm716 = vcmask 670720
        %v717 = vsel %vm716, %v709, %v711
        %v718 = vsel %vm716, %v711, %v713
        %v719 = vsel %vm716, %v713, %v715
        %v723 = vadd.f32 %v582, %v717
        %v724 = vadd.f32 %v583, %v718
        %v725 = vadd.f32 %v584, %v719
        %730 = vrot.lane.b32.xlu0 %v641, 81
        %v731 = vpop.permute.xlu0 %730
        %732 = vrot.lane.b32.xlu0 %v643, 81
        %v733 = vpop.permute.xlu0 %732
        %734 = vrot.lane.b32.xlu0 %v692, 81
        %v735 = vpop.permute.xlu0 %734
        %736 = vrot.lane.b32.xlu0 %v694, 81
        %v737 = vpop.permute.xlu0 %736
        %vm738 = vcmask 662528
        %v739 = vsel %vm738, %v731, %v733
        %v740 = vsel %vm738, %v733, %v735
        %v741 = vsel %vm738, %v735, %v737
        %v745 = vadd.f32 %v723, %v739
        %v746 = vadd.f32 %v724, %v740
        %v747 = vadd.f32 %v725, %v741
        %752 = vrot.lane.b32.xlu0 %v647, 80
        %v753 = vpop.permute.xlu0 %752
        %754 = vrot.lane.b32.xlu0 %v649, 80
        %v755 = vpop.permute.xlu0 %754
        %756 = vrot.lane.b32.xlu0 %v698, 80
        %v757 = vpop.permute.xlu0 %756
        %758 = vrot.lane.b32.xlu0 %v700, 80
        %v759 = vpop.permute.xlu0 %758
        %vm760 = vcmask 654336
        %v761 = vsel %vm760, %v753, %v755
        %v762 = vsel %vm760, %v755, %v757
        %v763 = vsel %vm760, %v757, %v759
        %v767 = vadd.f32 %v745, %v761
        %v768 = vadd.f32 %v746, %v762
        %v769 = vadd.f32 %v747, %v763
        %v770 = vld [vmem:[%s211 + $0x24] sm:$0xf]
        %v771 = vld [vmem:[%s211 + $0x28] sm:$0xf]
        %v772 = vld [vmem:[%s211 + $0x2c] sm:$0xf]
        %v773 = vld [vmem:[%s211 + $0x30] sm:$0xf]
        %v774 = vld [vmem:[%s211 + $0x34] sm:$0xf]
        %v775 = vld [vmem:[%s211 + $0x38] sm:$0xf]
        %v776 = vld [vmem:[%s211 + $0x3c] sm:$0xf]
        %v784 = vunpack.c.l.b16 %v770
        %v785 = vunpack.c.l.b16 %v771
        %v786 = vunpack.c.l.b16 %v772
        %v787 = vunpack.c.l.b16 %v773
        %v788 = vunpack.c.l.b16 %v774
        %v789 = vunpack.c.l.b16 %v775
        %v790 = vunpack.c.l.b16 %v776
        %v791 = vpack.c.b16 %v785, %v784
        %v792 = vpack.c.b16 %v787, %v786
        %v793 = vpack.c.b16 %v789, %v788
        %v794 = vpack.c.b16 %v790, %v790
        %v796 = vsel %vm257, %v791, 0
        %v799 = vsel %vm257, %v792, 0
        %v802 = vsel %vm257, %v793, 0
        %v805 = vsel %vm257, %v794, 0
        %807 = vmatprep.subr.bf16.mxu0 0
        %808 = vmatpush1.bf16.msra.mxu0 0
        %809 = vmatprep.subr.bf16.mxu0 0
        %810 = vmatpush1.bf16.msra.mxu0 0
        %811 = vmatprep.subr.bf16.mxu0 0
        %812 = vmatpush1.bf16.msra.mxu0 0
        %813 = vmatprep.subr.bf16.mxu0 0
        %814 = vmatpush1.bf16.msra.mxu0 0
        %815 = vmatprep.subr.bf16.mxu0 0
        %816 = vmatpush1.bf16.msra.mxu0 0
        %817 = vmatprep.subr.bf16.mxu0 0
        %818 = vmatpush1.bf16.msra.mxu0 0
        %819 = vmatprep.subr.bf16.mxu0 0
        %820 = vmatpush1.bf16.msra.mxu0 0
        %821 = vmatprep.subr.bf16.mxu0 %v269
        %822 = vmatpush1.bf16.msra.mxu0 %v266
        %823 = vmatprep.subr.bf16.mxu0 0
        %824 = vmatpush2.bf16.msra.mxu0 0
        %825 = vmatprep.subr.bf16.mxu0 0
        %826 = vmatpush2.bf16.msra.mxu0 0
        %827 = vmatprep.subr.bf16.mxu0 0
        %828 = vmatpush2.bf16.msra.mxu0 0
        %829 = vmatprep.subr.bf16.mxu0 0
        %830 = vmatpush2.bf16.msra.mxu0 0
        %831 = vmatprep.subr.bf16.mxu0 0
        %832 = vmatpush2.bf16.msra.mxu0 0
        %833 = vmatprep.subr.bf16.mxu0 0
        %834 = vmatpush2.bf16.msra.mxu0 0
        %835 = vmatprep.subr.bf16.mxu0 0
        %836 = vmatpush2.bf16.msra.mxu0 0
        %837 = vmatprep.subr.bf16.mxu0 0
        %838 = vmatpush2.bf16.msra.mxu0 0
        %839 = vmatprep.mubr.bf16.mxu0 0
        %840 = vmatmul.mubr.bf16.gmra.mxu0 %v796
        %v841 = vpop.f32.mrf.mxu0
        %v842 = vadd.f32 0.0, %v841
        %v843 = vpop.f32.mrf.mxu0
        %v844 = vadd.f32 0.0, %v843
        %v845 = vpop.f32.mrf.mxu0
        %v846 = vadd.f32 0.0, %v845
        %v847 = vpop.f32.mrf.mxu0
        %v848 = vadd.f32 0.0, %v847
        %849 = vmatprep.mubr.bf16.mxu0 0
        %850 = vmatmul.mubr.bf16.gmra.mxu0 %v799
        %v851 = vpop.f32.mrf.mxu0
        %v852 = vadd.f32 0.0, %v851
        %v853 = vpop.f32.mrf.mxu0
        %v854 = vadd.f32 0.0, %v853
        %v855 = vpop.f32.mrf.mxu0
        %v856 = vadd.f32 0.0, %v855
        %v857 = vpop.f32.mrf.mxu0
        %v858 = vadd.f32 0.0, %v857
        %859 = vmatprep.mubr.bf16.mxu0 0
        %860 = vmatmul.mubr.bf16.gmra.mxu0 %v802
        %v861 = vpop.f32.mrf.mxu0
        %v862 = vadd.f32 0.0, %v861
        %v863 = vpop.f32.mrf.mxu0
        %v864 = vadd.f32 0.0, %v863
        %v865 = vpop.f32.mrf.mxu0
        %v866 = vadd.f32 0.0, %v865
        %v867 = vpop.f32.mrf.mxu0
        %v868 = vadd.f32 0.0, %v867
        %869 = vmatprep.mubr.bf16.mxu0 0
        %870 = vmatmul.mubr.bf16.gmra.mxu0 %v805
        %v871 = vpop.f32.mrf.mxu0
        %v872 = vadd.f32 0.0, %v871
        %v873 = vpop.f32.mrf.mxu0
        %v874 = vadd.f32 0.0, %v873
        %v875 = vpop.f32.mrf.mxu0
        %v876 = vpop.f32.mrf.mxu0
        %877 = vdwg.mxu0
        %878 = vmatprep.subr.bf16.mxu0 0
        %879 = vmatpush1.bf16.msra.mxu0 0
        %880 = vmatprep.subr.bf16.mxu0 0
        %881 = vmatpush1.bf16.msra.mxu0 0
        %882 = vmatprep.subr.bf16.mxu0 0
        %883 = vmatpush1.bf16.msra.mxu0 0
        %884 = vmatprep.subr.bf16.mxu0 0
        %885 = vmatpush1.bf16.msra.mxu0 0
        %886 = vmatprep.subr.bf16.mxu0 0
        %887 = vmatpush1.bf16.msra.mxu0 0
        %888 = vmatprep.subr.bf16.mxu0 0
        %889 = vmatpush1.bf16.msra.mxu0 0
        %890 = vmatprep.subr.bf16.mxu0 0
        %891 = vmatpush1.bf16.msra.mxu0 0
        %892 = vmatprep.subr.bf16.mxu0 %v275
        %893 = vmatpush1.bf16.msra.mxu0 %v272
        %894 = vmatprep.subr.bf16.mxu0 0
        %895 = vmatpush2.bf16.msra.mxu0 0
        %896 = vmatprep.subr.bf16.mxu0 0
        %897 = vmatpush2.bf16.msra.mxu0 0
        %898 = vmatprep.subr.bf16.mxu0 0
        %899 = vmatpush2.bf16.msra.mxu0 0
        %900 = vmatprep.subr.bf16.mxu0 0
        %901 = vmatpush2.bf16.msra.mxu0 0
        %902 = vmatprep.subr.bf16.mxu0 0
        %903 = vmatpush2.bf16.msra.mxu0 0
        %904 = vmatprep.subr.bf16.mxu0 0
        %905 = vmatpush2.bf16.msra.mxu0 0
        %906 = vmatprep.subr.bf16.mxu0 0
        %907 = vmatpush2.bf16.msra.mxu0 0
        %908 = vmatprep.subr.bf16.mxu0 0
        %909 = vmatpush2.bf16.msra.mxu0 0
        %910 = vmatprep.mubr.bf16.mxu0 0
        %911 = vmatmul.mubr.bf16.gmra.mxu0 %v796
        %v912 = vpop.f32.mrf.mxu0
        %v913 = vadd.f32 0.0, %v912
        %v914 = vpop.f32.mrf.mxu0
        %v915 = vadd.f32 0.0, %v914
        %v916 = vpop.f32.mrf.mxu0
        %v917 = vadd.f32 0.0, %v916
        %v918 = vpop.f32.mrf.mxu0
        %v919 = vadd.f32 0.0, %v918
        %920 = vmatprep.mubr.bf16.mxu0 0
        %921 = vmatmul.mubr.bf16.gmra.mxu0 %v799
        %v922 = vpop.f32.mrf.mxu0
        %v923 = vadd.f32 0.0, %v922
        %v924 = vpop.f32.mrf.mxu0
        %v925 = vadd.f32 0.0, %v924
        %v926 = vpop.f32.mrf.mxu0
        %v927 = vadd.f32 0.0, %v926
        %v928 = vpop.f32.mrf.mxu0
        %v929 = vadd.f32 0.0, %v928
        %930 = vmatprep.mubr.bf16.mxu0 0
        %931 = vmatmul.mubr.bf16.gmra.mxu0 %v802
        %v932 = vpop.f32.mrf.mxu0
        %v933 = vadd.f32 0.0, %v932
        %v934 = vpop.f32.mrf.mxu0
        %v935 = vadd.f32 0.0, %v934
        %v936 = vpop.f32.mrf.mxu0
        %v937 = vadd.f32 0.0, %v936
        %v938 = vpop.f32.mrf.mxu0
        %v939 = vadd.f32 0.0, %v938
        %940 = vmatprep.mubr.bf16.mxu0 0
        %941 = vmatmul.mubr.bf16.gmra.mxu0 %v805
        %v942 = vpop.f32.mrf.mxu0
        %v943 = vadd.f32 0.0, %v942
        %v944 = vpop.f32.mrf.mxu0
        %v945 = vadd.f32 0.0, %v944
        %v946 = vpop.f32.mrf.mxu0
        %v947 = vpop.f32.mrf.mxu0
        %948 = vdwg.mxu0
        %953 = vrot.lane.b32.xlu0 %v842, 62
        %v954 = vpop.permute.xlu0 %953
        %955 = vrot.lane.b32.xlu0 %v844, 62
        %v956 = vpop.permute.xlu0 %955
        %957 = vrot.lane.b32.xlu0 %v913, 62
        %v958 = vpop.permute.xlu0 %957
        %959 = vrot.lane.b32.xlu0 %v915, 62
        %v960 = vpop.permute.xlu0 %959
        %vm961 = vcmask 506880
        %v962 = vsel %vm961, %v954, %v956
        %v963 = vsel %vm961, %v956, %v958
        %v964 = vsel %vm961, %v958, %v960
        %v968 = vadd.f32 %v767, %v962
        %v969 = vadd.f32 %v768, %v963
        %v970 = vadd.f32 %v769, %v964
        %975 = vrot.lane.b32.xlu0 %v846, 61
        %v976 = vpop.permute.xlu0 %975
        %977 = vrot.lane.b32.xlu0 %v848, 61
        %v978 = vpop.permute.xlu0 %977
        %979 = vrot.lane.b32.xlu0 %v917, 61
        %v980 = vpop.permute.xlu0 %979
        %981 = vrot.lane.b32.xlu0 %v919, 61
        %v982 = vpop.permute.xlu0 %981
        %vm983 = vcmask 498688
        %v984 = vsel %vm983, %v976, %v978
        %v985 = vsel %vm983, %v978, %v980
        %v986 = vsel %vm983, %v980, %v982
        %v990 = vadd.f32 %v968, %v984
        %v991 = vadd.f32 %v969, %v985
        %v992 = vadd.f32 %v970, %v986
        %997 = vrot.lane.b32.xlu0 %v852, 60
        %v998 = vpop.permute.xlu0 %997
        %999 = vrot.lane.b32.xlu0 %v854, 60
        %v1000 = vpop.permute.xlu0 %999
        %1001 = vrot.lane.b32.xlu0 %v923, 60
        %v1002 = vpop.permute.xlu0 %1001
        %1003 = vrot.lane.b32.xlu0 %v925, 60
        %v1004 = vpop.permute.xlu0 %1003
        %vm1005 = vcmask 490496
        %v1006 = vsel %vm1005, %v998, %v1000
        %v1007 = vsel %vm1005, %v1000, %v1002
        %v1008 = vsel %vm1005, %v1002, %v1004
        %v1012 = vadd.f32 %v990, %v1006
        %v1013 = vadd.f32 %v991, %v1007
        %v1014 = vadd.f32 %v992, %v1008
        %1019 = vrot.lane.b32.xlu0 %v856, 59
        %v1020 = vpop.permute.xlu0 %1019
        %1021 = vrot.lane.b32.xlu0 %v858, 59
        %v1022 = vpop.permute.xlu0 %1021
        %1023 = vrot.lane.b32.xlu0 %v927, 59
        %v1024 = vpop.permute.xlu0 %1023
        %1025 = vrot.lane.b32.xlu0 %v929, 59
        %v1026 = vpop.permute.xlu0 %1025
        %vm1027 = vcmask 482304
        %v1028 = vsel %vm1027, %v1020, %v1022
        %v1029 = vsel %vm1027, %v1022, %v1024
        %v1030 = vsel %vm1027, %v1024, %v1026
        %v1034 = vadd.f32 %v1012, %v1028
        %v1035 = vadd.f32 %v1013, %v1029
        %v1036 = vadd.f32 %v1014, %v1030
        %1041 = vrot.lane.b32.xlu0 %v862, 58
        %v1042 = vpop.permute.xlu0 %1041
        %1043 = vrot.lane.b32.xlu0 %v864, 58
        %v1044 = vpop.permute.xlu0 %1043
        %1045 = vrot.lane.b32.xlu0 %v933, 58
        %v1046 = vpop.permute.xlu0 %1045
        %1047 = vrot.lane.b32.xlu0 %v935, 58
        %v1048 = vpop.permute.xlu0 %1047
        %vm1049 = vcmask 474112
        %v1050 = vsel %vm1049, %v1042, %v1044
        %v1051 = vsel %vm1049, %v1044, %v1046
        %v1052 = vsel %vm1049, %v1046, %v1048
        %v1056 = vadd.f32 %v1034, %v1050
        %v1057 = vadd.f32 %v1035, %v1051
        %v1058 = vadd.f32 %v1036, %v1052
        %1063 = vrot.lane.b32.xlu0 %v866, 57
        %v1064 = vpop.permute.xlu0 %1063
        %1065 = vrot.lane.b32.xlu0 %v868, 57
        %v1066 = vpop.permute.xlu0 %1065
        %1067 = vrot.lane.b32.xlu0 %v937, 57
        %v1068 = vpop.permute.xlu0 %1067
        %1069 = vrot.lane.b32.xlu0 %v939, 57
        %v1070 = vpop.permute.xlu0 %1069
        %vm1071 = vcmask 465920
        %v1072 = vsel %vm1071, %v1064, %v1066
        %v1073 = vsel %vm1071, %v1066, %v1068
        %v1074 = vsel %vm1071, %v1068, %v1070
        %v1078 = vadd.f32 %v1056, %v1072
        %v1079 = vadd.f32 %v1057, %v1073
        %v1080 = vadd.f32 %v1058, %v1074
        %1085 = vrot.lane.b32.xlu0 %v872, 56
        %v1086 = vpop.permute.xlu0 %1085
        %1087 = vrot.lane.b32.xlu0 %v874, 56
        %v1088 = vpop.permute.xlu0 %1087
        %1089 = vrot.lane.b32.xlu0 %v943, 56
        %v1090 = vpop.permute.xlu0 %1089
        %1091 = vrot.lane.b32.xlu0 %v945, 56
        %v1092 = vpop.permute.xlu0 %1091
        %vm1093 = vcmask 457728
        %v1094 = vsel %vm1093, %v1086, %v1088
        %v1095 = vsel %vm1093, %v1088, %v1090
        %v1096 = vsel %vm1093, %v1090, %v1092
        %v1100 = vadd.f32 %v1078, %v1094
        %v1101 = vadd.f32 %v1079, %v1095
        %v1102 = vadd.f32 %v1080, %v1096
        %v1103 = vld [vmem:[%s211 + $0x40] sm:$0xf]
        %v1104 = vld [vmem:[%s211 + $0x44] sm:$0xf]
        %v1105 = vld [vmem:[%s211 + $0x48] sm:$0xf]
        %v1109 = vunpack.c.l.b16 %v1103
        %v1110 = vunpack.c.l.b16 %v1104
        %v1111 = vunpack.c.l.b16 %v1105
        %v1112 = vpack.c.b16 %v1110, %v1109
        %v1113 = vpack.c.b16 %v1111, %v1111
        %v1115 = vsel %vm257, %v1112, 0
        %v1118 = vsel %vm257, %v1113, 0
        %1120 = vmatprep.subr.bf16.mxu0 0
        %1121 = vmatpush1.bf16.msra.mxu0 0
        %1122 = vmatprep.subr.bf16.mxu0 0
        %1123 = vmatpush1.bf16.msra.mxu0 0
        %1124 = vmatprep.subr.bf16.mxu0 0
        %1125 = vmatpush1.bf16.msra.mxu0 0
        %1126 = vmatprep.subr.bf16.mxu0 0
        %1127 = vmatpush1.bf16.msra.mxu0 0
        %1128 = vmatprep.subr.bf16.mxu0 0
        %1129 = vmatpush1.bf16.msra.mxu0 0
        %1130 = vmatprep.subr.bf16.mxu0 0
        %1131 = vmatpush1.bf16.msra.mxu0 0
        %1132 = vmatprep.subr.bf16.mxu0 0
        %1133 = vmatpush1.bf16.msra.mxu0 0
        %1134 = vmatprep.subr.bf16.mxu0 %v269
        %1135 = vmatpush1.bf16.msra.mxu0 %v266
        %1136 = vmatprep.subr.bf16.mxu0 0
        %1137 = vmatpush2.bf16.msra.mxu0 0
        %1138 = vmatprep.subr.bf16.mxu0 0
        %1139 = vmatpush2.bf16.msra.mxu0 0
        %1140 = vmatprep.subr.bf16.mxu0 0
        %1141 = vmatpush2.bf16.msra.mxu0 0
        %1142 = vmatprep.subr.bf16.mxu0 0
        %1143 = vmatpush2.bf16.msra.mxu0 0
        %1144 = vmatprep.subr.bf16.mxu0 0
        %1145 = vmatpush2.bf16.msra.mxu0 0
        %1146 = vmatprep.subr.bf16.mxu0 0
        %1147 = vmatpush2.bf16.msra.mxu0 0
        %1148 = vmatprep.subr.bf16.mxu0 0
        %1149 = vmatpush2.bf16.msra.mxu0 0
        %1150 = vmatprep.subr.bf16.mxu0 0
        %1151 = vmatpush2.bf16.msra.mxu0 0
        %1152 = vmatprep.mubr.bf16.mxu0 0
        %1153 = vmatmul.mubr.bf16.gmra.mxu0 %v1115
        %v1154 = vpop.f32.mrf.mxu0
        %v1155 = vadd.f32 0.0, %v1154
        %v1156 = vpop.f32.mrf.mxu0
        %v1157 = vadd.f32 0.0, %v1156
        %v1158 = vpop.f32.mrf.mxu0
        %v1159 = vadd.f32 0.0, %v1158
        %v1160 = vpop.f32.mrf.mxu0
        %v1161 = vadd.f32 0.0, %v1160
        %1162 = vmatprep.mubr.bf16.mxu0 0
        %1163 = vmatmul.mubr.bf16.gmra.mxu0 %v1118
        %v1164 = vpop.f32.mrf.mxu0
        %v1165 = vadd.f32 0.0, %v1164
        %v1166 = vpop.f32.mrf.mxu0
        %v1167 = vadd.f32 0.0, %v1166
        %v1168 = vpop.f32.mrf.mxu0
        %v1169 = vpop.f32.mrf.mxu0
        %1170 = vdwg.mxu0
        %1171 = vmatprep.subr.bf16.mxu0 0
        %1172 = vmatpush1.bf16.msra.mxu0 0
        %1173 = vmatprep.subr.bf16.mxu0 0
        %1174 = vmatpush1.bf16.msra.mxu0 0
        %1175 = vmatprep.subr.bf16.mxu0 0
        %1176 = vmatpush1.bf16.msra.mxu0 0
        %1177 = vmatprep.subr.bf16.mxu0 0
        %1178 = vmatpush1.bf16.msra.mxu0 0
        %1179 = vmatprep.subr.bf16.mxu0 0
        %1180 = vmatpush1.bf16.msra.mxu0 0
        %1181 = vmatprep.subr.bf16.mxu0 0
        %1182 = vmatpush1.bf16.msra.mxu0 0
        %1183 = vmatprep.subr.bf16.mxu0 0
        %1184 = vmatpush1.bf16.msra.mxu0 0
        %1185 = vmatprep.subr.bf16.mxu0 %v275
        %1186 = vmatpush1.bf16.msra.mxu0 %v272
        %1187 = vmatprep.subr.bf16.mxu0 0
        %1188 = vmatpush2.bf16.msra.mxu0 0
        %1189 = vmatprep.subr.bf16.mxu0 0
        %1190 = vmatpush2.bf16.msra.mxu0 0
        %1191 = vmatprep.subr.bf16.mxu0 0
        %1192 = vmatpush2.bf16.msra.mxu0 0
        %1193 = vmatprep.subr.bf16.mxu0 0
        %1194 = vmatpush2.bf16.msra.mxu0 0
        %1195 = vmatprep.subr.bf16.mxu0 0
        %1196 = vmatpush2.bf16.msra.mxu0 0
        %1197 = vmatprep.subr.bf16.mxu0 0
        %1198 = vmatpush2.bf16.msra.mxu0 0
        %1199 = vmatprep.subr.bf16.mxu0 0
        %1200 = vmatpush2.bf16.msra.mxu0 0
        %1201 = vmatprep.subr.bf16.mxu0 0
        %1202 = vmatpush2.bf16.msra.mxu0 0
        %1203 = vmatprep.mubr.bf16.mxu0 0
        %1204 = vmatmul.mubr.bf16.gmra.mxu0 %v1115
        %v1205 = vpop.f32.mrf.mxu0
        %v1206 = vadd.f32 0.0, %v1205
        %v1207 = vpop.f32.mrf.mxu0
        %v1208 = vadd.f32 0.0, %v1207
        %v1209 = vpop.f32.mrf.mxu0
        %v1210 = vadd.f32 0.0, %v1209
        %v1211 = vpop.f32.mrf.mxu0
        %v1212 = vadd.f32 0.0, %v1211
        %1213 = vmatprep.mubr.bf16.mxu0 0
        %1214 = vmatmul.mubr.bf16.gmra.mxu0 %v1118
        %v1215 = vpop.f32.mrf.mxu0
        %v1216 = vadd.f32 0.0, %v1215
        %v1217 = vpop.f32.mrf.mxu0
        %v1218 = vadd.f32 0.0, %v1217
        %v1219 = vpop.f32.mrf.mxu0
        %v1220 = vpop.f32.mrf.mxu0
        %1221 = vdwg.mxu0
        %1226 = vrot.lane.b32.xlu0 %v1155, 38
        %v1227 = vpop.permute.xlu0 %1226
        %1228 = vrot.lane.b32.xlu0 %v1157, 38
        %v1229 = vpop.permute.xlu0 %1228
        %1230 = vrot.lane.b32.xlu0 %v1206, 38
        %v1231 = vpop.permute.xlu0 %1230
        %1232 = vrot.lane.b32.xlu0 %v1208, 38
        %v1233 = vpop.permute.xlu0 %1232
        %vm1234 = vcmask 310272
        %v1235 = vsel %vm1234, %v1227, %v1229
        %v1236 = vsel %vm1234, %v1229, %v1231
        %v1237 = vsel %vm1234, %v1231, %v1233
        %v1241 = vadd.f32 %v1100, %v1235
        %v1242 = vadd.f32 %v1101, %v1236
        %v1243 = vadd.f32 %v1102, %v1237
        %1248 = vrot.lane.b32.xlu0 %v1159, 37
        %v1249 = vpop.permute.xlu0 %1248
        %1250 = vrot.lane.b32.xlu0 %v1161, 37
        %v1251 = vpop.permute.xlu0 %1250
        %1252 = vrot.lane.b32.xlu0 %v1210, 37
        %v1253 = vpop.permute.xlu0 %1252
        %1254 = vrot.lane.b32.xlu0 %v1212, 37
        %v1255 = vpop.permute.xlu0 %1254
        %vm1256 = vcmask 302080
        %v1257 = vsel %vm1256, %v1249, %v1251
        %v1258 = vsel %vm1256, %v1251, %v1253
        %v1259 = vsel %vm1256, %v1253, %v1255
        %v1263 = vadd.f32 %v1241, %v1257
        %v1264 = vadd.f32 %v1242, %v1258
        %v1265 = vadd.f32 %v1243, %v1259
        %1270 = vrot.lane.b32.xlu0 %v1165, 36
        %v1271 = vpop.permute.xlu0 %1270
        %1272 = vrot.lane.b32.xlu0 %v1167, 36
        %v1273 = vpop.permute.xlu0 %1272
        %1274 = vrot.lane.b32.xlu0 %v1216, 36
        %v1275 = vpop.permute.xlu0 %1274
        %1276 = vrot.lane.b32.xlu0 %v1218, 36
        %v1277 = vpop.permute.xlu0 %1276
        %vm1278 = vcmask 293888
        %v1279 = vsel %vm1278, %v1271, %v1273
        %v1280 = vsel %vm1278, %v1273, %v1275
        %v1281 = vsel %vm1278, %v1275, %v1277
        %v1285 = vadd.f32 %v1263, %v1279
        %v1286 = vadd.f32 %v1264, %v1280
        %v1287 = vadd.f32 %v1265, %v1281
        %v1288 = vld [vmem:[%s211 + $0x4c] sm:$0xf]
        %v1289 = vld [vmem:[%s211 + $0x50] sm:$0xf]
        %v1290 = vld [vmem:[%s211 + $0x54] sm:$0xf]
        %v1294 = vunpack.c.l.b16 %v1288
        %v1295 = vunpack.c.l.b16 %v1289
        %v1296 = vunpack.c.l.b16 %v1290
        %v1297 = vpack.c.b16 %v1295, %v1294
        %v1298 = vpack.c.b16 %v1296, %v1296
        %v1300 = vsel %vm257, %v1297, 0
        %v1303 = vsel %vm257, %v1298, 0
        %1305 = vmatprep.subr.bf16.mxu0 0
        %1306 = vmatpush1.bf16.msra.mxu0 0
        %1307 = vmatprep.subr.bf16.mxu0 0
        %1308 = vmatpush1.bf16.msra.mxu0 0
        %1309 = vmatprep.subr.bf16.mxu0 0
        %1310 = vmatpush1.bf16.msra.mxu0 0
        %1311 = vmatprep.subr.bf16.mxu0 0
        %1312 = vmatpush1.bf16.msra.mxu0 0
        %1313 = vmatprep.subr.bf16.mxu0 0
        %1314 = vmatpush1.bf16.msra.mxu0 0
        %1315 = vmatprep.subr.bf16.mxu0 0
        %1316 = vmatpush1.bf16.msra.mxu0 0
        %1317 = vmatprep.subr.bf16.mxu0 0
        %1318 = vmatpush1.bf16.msra.mxu0 0
        %1319 = vmatprep.subr.bf16.mxu0 %v269
        %1320 = vmatpush1.bf16.msra.mxu0 %v266
        %1321 = vmatprep.subr.bf16.mxu0 0
        %1322 = vmatpush2.bf16.msra.mxu0 0
        %1323 = vmatprep.subr.bf16.mxu0 0
        %1324 = vmatpush2.bf16.msra.mxu0 0
        %1325 = vmatprep.subr.bf16.mxu0 0
        %1326 = vmatpush2.bf16.msra.mxu0 0
        %1327 = vmatprep.subr.bf16.mxu0 0
        %1328 = vmatpush2.bf16.msra.mxu0 0
        %1329 = vmatprep.subr.bf16.mxu0 0
        %1330 = vmatpush2.bf16.msra.mxu0 0
        %1331 = vmatprep.subr.bf16.mxu0 0
        %1332 = vmatpush2.bf16.msra.mxu0 0
        %1333 = vmatprep.subr.bf16.mxu0 0
        %1334 = vmatpush2.bf16.msra.mxu0 0
        %1335 = vmatprep.subr.bf16.mxu0 0
        %1336 = vmatpush2.bf16.msra.mxu0 0
        %1337 = vmatprep.mubr.bf16.mxu0 0
        %1338 = vmatmul.mubr.bf16.gmra.mxu0 %v1300
        %v1339 = vpop.f32.mrf.mxu0
        %v1340 = vadd.f32 0.0, %v1339
        %v1341 = vpop.f32.mrf.mxu0
        %v1342 = vadd.f32 0.0, %v1341
        %v1343 = vpop.f32.mrf.mxu0
        %v1344 = vadd.f32 0.0, %v1343
        %v1345 = vpop.f32.mrf.mxu0
        %v1346 = vadd.f32 0.0, %v1345
        %1347 = vmatprep.mubr.bf16.mxu0 0
        %1348 = vmatmul.mubr.bf16.gmra.mxu0 %v1303
        %v1349 = vpop.f32.mrf.mxu0
        %v1350 = vadd.f32 0.0, %v1349
        %v1351 = vpop.f32.mrf.mxu0
        %v1352 = vadd.f32 0.0, %v1351
        %v1353 = vpop.f32.mrf.mxu0
        %v1354 = vpop.f32.mrf.mxu0
        %1355 = vdwg.mxu0
        %1356 = vmatprep.subr.bf16.mxu0 0
        %1357 = vmatpush1.bf16.msra.mxu0 0
        %1358 = vmatprep.subr.bf16.mxu0 0
        %1359 = vmatpush1.bf16.msra.mxu0 0
        %1360 = vmatprep.subr.bf16.mxu0 0
        %1361 = vmatpush1.bf16.msra.mxu0 0
        %1362 = vmatprep.subr.bf16.mxu0 0
        %1363 = vmatpush1.bf16.msra.mxu0 0
        %1364 = vmatprep.subr.bf16.mxu0 0
        %1365 = vmatpush1.bf16.msra.mxu0 0
        %1366 = vmatprep.subr.bf16.mxu0 0
        %1367 = vmatpush1.bf16.msra.mxu0 0
        %1368 = vmatprep.subr.bf16.mxu0 0
        %1369 = vmatpush1.bf16.msra.mxu0 0
        %1370 = vmatprep.subr.bf16.mxu0 %v275
        %1371 = vmatpush1.bf16.msra.mxu0 %v272
        %1372 = vmatprep.subr.bf16.mxu0 0
        %1373 = vmatpush2.bf16.msra.mxu0 0
        %1374 = vmatprep.subr.bf16.mxu0 0
        %1375 = vmatpush2.bf16.msra.mxu0 0
        %1376 = vmatprep.subr.bf16.mxu0 0
        %1377 = vmatpush2.bf16.msra.mxu0 0
        %1378 = vmatprep.subr.bf16.mxu0 0
        %1379 = vmatpush2.bf16.msra.mxu0 0
        %1380 = vmatprep.subr.bf16.mxu0 0
        %1381 = vmatpush2.bf16.msra.mxu0 0
        %1382 = vmatprep.subr.bf16.mxu0 0
        %1383 = vmatpush2.bf16.msra.mxu0 0
        %1384 = vmatprep.subr.bf16.mxu0 0
        %1385 = vmatpush2.bf16.msra.mxu0 0
        %1386 = vmatprep.subr.bf16.mxu0 0
        %1387 = vmatpush2.bf16.msra.mxu0 0
        %1388 = vmatprep.mubr.bf16.mxu0 0
        %1389 = vmatmul.mubr.bf16.gmra.mxu0 %v1300
        %v1390 = vpop.f32.mrf.mxu0
        %v1391 = vadd.f32 0.0, %v1390
        %v1392 = vpop.f32.mrf.mxu0
        %v1393 = vadd.f32 0.0, %v1392
        %v1394 = vpop.f32.mrf.mxu0
        %v1395 = vadd.f32 0.0, %v1394
        %v1396 = vpop.f32.mrf.mxu0
        %v1397 = vadd.f32 0.0, %v1396
        %1398 = vmatprep.mubr.bf16.mxu0 0
        %1399 = vmatmul.mubr.bf16.gmra.mxu0 %v1303
        %v1400 = vpop.f32.mrf.mxu0
        %v1401 = vadd.f32 0.0, %v1400
        %v1402 = vpop.f32.mrf.mxu0
        %v1403 = vadd.f32 0.0, %v1402
        %v1404 = vpop.f32.mrf.mxu0
        %v1405 = vpop.f32.mrf.mxu0
        %1406 = vdwg.mxu0
        %1411 = vrot.lane.b32.xlu0 %v1340, 17
        %v1412 = vpop.permute.xlu0 %1411
        %1413 = vrot.lane.b32.xlu0 %v1342, 17
        %v1414 = vpop.permute.xlu0 %1413
        %1415 = vrot.lane.b32.xlu0 %v1391, 17
        %v1416 = vpop.permute.xlu0 %1415
        %1417 = vrot.lane.b32.xlu0 %v1393, 17
        %v1418 = vpop.permute.xlu0 %1417
        %vm1419 = vcmask 138240
        %v1420 = vsel %vm1419, %v1412, %v1414
        %v1421 = vsel %vm1419, %v1414, %v1416
        %v1422 = vsel %vm1419, %v1416, %v1418
        %v1426 = vadd.f32 %v1285, %v1420
        %v1427 = vadd.f32 %v1286, %v1421
        %v1428 = vadd.f32 %v1287, %v1422
        %1433 = vrot.lane.b32.xlu0 %v1344, 15
        %v1434 = vpop.permute.xlu0 %1433
        %1435 = vrot.lane.b32.xlu0 %v1346, 15
        %v1436 = vpop.permute.xlu0 %1435
        %1437 = vrot.lane.b32.xlu0 %v1395, 15
        %v1438 = vpop.permute.xlu0 %1437
        %1439 = vrot.lane.b32.xlu0 %v1397, 15
        %v1440 = vpop.permute.xlu0 %1439
        %vm1441 = vcmask 121856
        %v1442 = vsel %vm1441, %v1434, %v1436
        %v1443 = vsel %vm1441, %v1436, %v1438
        %v1444 = vsel %vm1441, %v1438, %v1440
        %v1448 = vadd.f32 %v1426, %v1442
        %v1449 = vadd.f32 %v1427, %v1443
        %v1450 = vadd.f32 %v1428, %v1444
        %1455 = vrot.lane.b32.xlu0 %v1350, 13
        %v1456 = vpop.permute.xlu0 %1455
        %1457 = vrot.lane.b32.xlu0 %v1352, 13
        %v1458 = vpop.permute.xlu0 %1457
        %1459 = vrot.lane.b32.xlu0 %v1401, 13
        %v1460 = vpop.permute.xlu0 %1459
        %1461 = vrot.lane.b32.xlu0 %v1403, 13
        %v1462 = vpop.permute.xlu0 %1461
        %vm1463 = vcmask 105472
        %v1464 = vsel %vm1463, %v1456, %v1458
        %v1465 = vsel %vm1463, %v1458, %v1460
        %v1466 = vsel %vm1463, %v1460, %v1462
        %v1470 = vadd.f32 %v1448, %v1464
        %v1471 = vadd.f32 %v1449, %v1465
        %v1472 = vadd.f32 %v1450, %v1466
        %v1473 = vld [vmem:[%s211 + $0x58] sm:$0xf]
        %v1474 = vld [vmem:[%s211 + $0x5c] sm:$0xf]
        %v1475 = vld [vmem:[%s211 + $0x60] sm:$0xf]
        %v1479 = vunpack.c.l.b16 %v1473
        %v1480 = vunpack.c.l.b16 %v1474
        %v1481 = vunpack.c.l.b16 %v1475
        %v1482 = vpack.c.b16 %v1480, %v1479
        %v1483 = vpack.c.b16 %v1481, %v1481
        %v1485 = vsel %vm257, %v1482, 0
        %v1488 = vsel %vm257, %v1483, 0
        %1490 = vmatprep.subr.bf16.mxu0 0
        %1491 = vmatpush1.bf16.msra.mxu0 0
        %1492 = vmatprep.subr.bf16.mxu0 0
        %1493 = vmatpush1.bf16.msra.mxu0 0
        %1494 = vmatprep.subr.bf16.mxu0 0
        %1495 = vmatpush1.bf16.msra.mxu0 0
        %1496 = vmatprep.subr.bf16.mxu0 0
        %1497 = vmatpush1.bf16.msra.mxu0 0
        %1498 = vmatprep.subr.bf16.mxu0 0
        %1499 = vmatpush1.bf16.msra.mxu0 0
        %1500 = vmatprep.subr.bf16.mxu0 0
        %1501 = vmatpush1.bf16.msra.mxu0 0
        %1502 = vmatprep.subr.bf16.mxu0 0
        %1503 = vmatpush1.bf16.msra.mxu0 0
        %1504 = vmatprep.subr.bf16.mxu0 %v269
        %1505 = vmatpush1.bf16.msra.mxu0 %v266
        %1506 = vmatprep.subr.bf16.mxu0 0
        %1507 = vmatpush2.bf16.msra.mxu0 0
        %1508 = vmatprep.subr.bf16.mxu0 0
        %1509 = vmatpush2.bf16.msra.mxu0 0
        %1510 = vmatprep.subr.bf16.mxu0 0
        %1511 = vmatpush2.bf16.msra.mxu0 0
        %1512 = vmatprep.subr.bf16.mxu0 0
        %1513 = vmatpush2.bf16.msra.mxu0 0
        %1514 = vmatprep.subr.bf16.mxu0 0
        %1515 = vmatpush2.bf16.msra.mxu0 0
        %1516 = vmatprep.subr.bf16.mxu0 0
        %1517 = vmatpush2.bf16.msra.mxu0 0
        %1518 = vmatprep.subr.bf16.mxu0 0
        %1519 = vmatpush2.bf16.msra.mxu0 0
        %1520 = vmatprep.subr.bf16.mxu0 0
        %1521 = vmatpush2.bf16.msra.mxu0 0
        %1522 = vmatprep.mubr.bf16.mxu0 0
        %1523 = vmatmul.mubr.bf16.gmra.mxu0 %v1485
        %v1524 = vpop.f32.mrf.mxu0
        %v1525 = vpop.f32.mrf.mxu0
        %v1526 = vadd.f32 0.0, %v1525
        %v1527 = vpop.f32.mrf.mxu0
        %v1528 = vpop.f32.mrf.mxu0
        %v1529 = vadd.f32 0.0, %v1528
        %1530 = vmatprep.mubr.bf16.mxu0 0
        %1531 = vmatmul.mubr.bf16.gmra.mxu0 %v1488
        %v1532 = vpop.f32.mrf.mxu0
        %v1533 = vpop.f32.mrf.mxu0
        %v1534 = vadd.f32 0.0, %v1533
        %v1535 = vpop.f32.mrf.mxu0
        %v1536 = vpop.f32.mrf.mxu0
        %1537 = vdwg.mxu0
        %1538 = vmatprep.subr.bf16.mxu0 0
        %1539 = vmatpush1.bf16.msra.mxu0 0
        %1540 = vmatprep.subr.bf16.mxu0 0
        %1541 = vmatpush1.bf16.msra.mxu0 0
        %1542 = vmatprep.subr.bf16.mxu0 0
        %1543 = vmatpush1.bf16.msra.mxu0 0
        %1544 = vmatprep.subr.bf16.mxu0 0
        %1545 = vmatpush1.bf16.msra.mxu0 0
        %1546 = vmatprep.subr.bf16.mxu0 0
        %1547 = vmatpush1.bf16.msra.mxu0 0
        %1548 = vmatprep.subr.bf16.mxu0 0
        %1549 = vmatpush1.bf16.msra.mxu0 0
        %1550 = vmatprep.subr.bf16.mxu0 0
        %1551 = vmatpush1.bf16.msra.mxu0 0
        %1552 = vmatprep.subr.bf16.mxu0 %v275
        %1553 = vmatpush1.bf16.msra.mxu0 %v272
        %1554 = vmatprep.subr.bf16.mxu0 0
        %1555 = vmatpush2.bf16.msra.mxu0 0
        %1556 = vmatprep.subr.bf16.mxu0 0
        %1557 = vmatpush2.bf16.msra.mxu0 0
        %1558 = vmatprep.subr.bf16.mxu0 0
        %1559 = vmatpush2.bf16.msra.mxu0 0
        %1560 = vmatprep.subr.bf16.mxu0 0
        %1561 = vmatpush2.bf16.msra.mxu0 0
        %1562 = vmatprep.subr.bf16.mxu0 0
        %1563 = vmatpush2.bf16.msra.mxu0 0
        %1564 = vmatprep.subr.bf16.mxu0 0
        %1565 = vmatpush2.bf16.msra.mxu0 0
        %1566 = vmatprep.subr.bf16.mxu0 0
        %1567 = vmatpush2.bf16.msra.mxu0 0
        %1568 = vmatprep.subr.bf16.mxu0 0
        %1569 = vmatpush2.bf16.msra.mxu0 0
        %1570 = vmatprep.mubr.bf16.mxu0 0
        %1571 = vmatmul.mubr.bf16.gmra.mxu0 %v1485
        %v1572 = vpop.f32.mrf.mxu0
        %v1573 = vadd.f32 0.0, %v1572
        %v1574 = vpop.f32.mrf.mxu0
        %v1575 = vadd.f32 0.0, %v1574
        %v1576 = vpop.f32.mrf.mxu0
        %v1577 = vadd.f32 0.0, %v1576
        %v1578 = vpop.f32.mrf.mxu0
        %v1579 = vadd.f32 0.0, %v1578
        %1580 = vmatprep.mubr.bf16.mxu0 0
        %1581 = vmatmul.mubr.bf16.gmra.mxu0 %v1488
        %v1582 = vpop.f32.mrf.mxu0
        %v1583 = vadd.f32 0.0, %v1582
        %v1584 = vpop.f32.mrf.mxu0
        %v1585 = vadd.f32 0.0, %v1584
        %v1586 = vpop.f32.mrf.mxu0
        %v1587 = vpop.f32.mrf.mxu0
        %1588 = vdwg.mxu0
        %1592 = vrot.lane.b32.xlu0 %v1526, 124
        %v1593 = vpop.permute.xlu0 %1592
        %1594 = vrot.lane.b32.xlu0 %v1573, 124
        %v1595 = vpop.permute.xlu0 %1594
        %1596 = vrot.lane.b32.xlu0 %v1575, 124
        %v1597 = vpop.permute.xlu0 %1596
        %vm1598 = vcmask 1014784
        %v1599 = vsel %vm1598, %v1593, %v1595
        %v1600 = vsel %vm1598, %v1595, %v1597
        %v1604 = vadd.f32 %v1470, %v1599
        %v1605 = vadd.f32 %v1471, %v1600
        %v1606 = vadd.f32 %v1472, %v1597
        %1610 = vrot.lane.b32.xlu0 %v1529, 121
        %v1611 = vpop.permute.xlu0 %1610
        %1612 = vrot.lane.b32.xlu0 %v1577, 121
        %v1613 = vpop.permute.xlu0 %1612
        %1614 = vrot.lane.b32.xlu0 %v1579, 121
        %v1615 = vpop.permute.xlu0 %1614
        %vm1616 = vcmask 990208
        %v1617 = vsel %vm1616, %v1611, %v1613
        %v1618 = vsel %vm1616, %v1613, %v1615
        %v1622 = vadd.f32 %v1604, %v1617
        %v1623 = vadd.f32 %v1605, %v1618
        %v1624 = vadd.f32 %v1606, %v1615
        %1628 = vrot.lane.b32.xlu0 %v1534, 118
        %v1629 = vpop.permute.xlu0 %1628
        %1630 = vrot.lane.b32.xlu0 %v1583, 118
        %v1631 = vpop.permute.xlu0 %1630
        %1632 = vrot.lane.b32.xlu0 %v1585, 118
        %v1633 = vpop.permute.xlu0 %1632
        %vm1634 = vcmask 965632
        %v1635 = vsel %vm1634, %v1629, %v1631
        %v1636 = vsel %vm1634, %v1631, %v1633
        %v1640 = vadd.f32 %v1622, %v1635
        %v1641 = vadd.f32 %v1623, %v1636
        %v1642 = vadd.f32 %v1624, %v1633
        %v1643 = vld [vmem:[%s198] sm:$0xff]
        %v1644 = vld [vmem:[%s198 + $0x8] sm:$0xff]
        %v1645 = vld [vmem:[%s198 + $0x10] sm:$0xff]
        %v1646 = vadd.f32 %v1643, %v1640
        %v1647 = vadd.f32 %v1644, %v1641
        %v1648 = vadd.f32 %v1645, %v1642
        %1649 = vst [vmem:[%s198] sm:$0xff] %v1646
        %1650 = vst [vmem:[%s198 + $0x8] sm:$0xff] %v1647
        %vm1651 = vcmask 785408
        %1652 = vst.msk [vmem:[%s198 + $0x10] sm:$0xff] %vm1651, %v1648
        %s1653 = sand.u32 %s112, 1
        %s1654 = scalar_lea.sflag [#allocation3], %s1653
        %s1655 = sand.u32 %s112, 1
        %s1656 = smul.addr %s1655, 24
        %s1657 = scalar_lea.vmem [#allocation2], %s1656
        // Predicated region
        $region37: #{tpu_custom_call.1} parent=31 // pred_check
          %p1658 = pneg %p122
        $region38: #{tpu_custom_call.1} parent=31 // pred_check_branch
          %1660 = sbr.rel (%p1658) target = $region40
        $region39: #{tpu_custom_call.1} parent=31 // pred_region
          %s1662 = ssub.s32 384, 384
          %1663 = vsyncadd %s1654, %s1662
          %s1664 = smul.addr %s21, 3
          %s1665 = smul.addr %s1664, 128
          %s1666 = scalar_lea.hbm %s3, %s1665
          %s1668 = sshll.u32 %s1657, 4
          %s1669 = int_to_ptr.vmem [resolvable:$true] %s1668
          %1671 = dma.vmem_to_hbm [thread:$0]  %s1669, 384, %s1666, %s1654
        $region40: #{tpu_custom_call.1} parent=31 // pred_fallthru
          _
      $region32: #{tpu_custom_call.1} parent=5 // pred_fallthru
        _
      %p1672 = scmp.le.s32.totalorder 2, %s12
      // Predicated region
      $region41: #{tpu_custom_call.1} parent=5 // pred_check
        %p1673 = pneg %p1672
      $region42: #{tpu_custom_call.1} parent=5 // pred_check_branch
        %1675 = sbr.rel (%p1673) target = $region44
      $region43: #{tpu_custom_call.1} parent=5 // pred_region
        %s1676 = ssub.s32 %s12, 2
        // Predicated region
        $region45: #{tpu_custom_call.1} parent=43 // pred_check
          %p1677 = pneg %p128
        $region46: #{tpu_custom_call.1} parent=43 // pred_check_branch
          %1679 = sbr.rel (%p1677) target = $region48
        $region47: #{tpu_custom_call.1} parent=43 // pred_region
          %s1680 = sand.u32 %s113, 1
          %s1681 = scalar_lea.sflag [#allocation3], %s1680
          %s1682 = sand.u32 %s113, 1
          %s1683 = smul.addr %s1682, 24
          %s1684 = scalar_lea.vmem [#allocation2], %s1683
          %1685 = dma.done %s1681, 384
        $region48: #{tpu_custom_call.1} parent=43 // pred_fallthru
          _
      $region44: #{tpu_custom_call.1} parent=5 // pred_fallthru
        _
    $region6: #{tpu_custom_call.1} parent=1 // loop_footer
      %s16 = sadd.s32 1, %s12
    $region7: #{tpu_custom_call.1} parent=1 // loop_footer_branch
      %11 = sbr.rel target = $region3
    $region8: #{tpu_custom_call.1} parent=1 // loop_exit
      _
    %1686 = vsyncpa [#allocation3], 1
    %s1687 = scalar_lea.sflag [#allocation3], 1
    %1688 = vsyncpa %s1687, 1

</llo_original>
